<compile_context>
chip_gen: v6e
topology: v6e:2x2x1
jax: 0.10.0
libtpu: 0.0.40
codegen_flags: <defaults>
</compile_context>

<pallas_src>
import math
import numpy as np
import jax
import jax.numpy as jnp
from jax import lax
from jax.experimental import pallas as pl
from jax.experimental.pallas import tpu as pltpu

# ---- synthetic config (mirrors MyParaCNN.__init__ hyper-parameters) --------
VOCAB       = 50     # embed_size
EMBED_DIM   = 32     # embed_dim (D)
PAD_IDX     = 0      # padding_idx
LABEL_SIZE  = 4      # label_size
IN_CHANNELS = 1      # config.in_channels
OUT_CH      = 16     # config.out_channels (C)
KSIZE       = 3      # config.kernel_sizes = [3]
HIDDEN      = 32     # config.p_hidden_size (H)
NUM_LAYERS  = 1      # config.p_num_layers
SENTS       = 6      # sentences in the paragraph (LSTM time axis)
SEQLEN      = 12     # tokens per sentence

LOUT = SEQLEN - KSIZE + 1        # valid conv positions per sentence (10)
LPAD = 16                        # sentence rows padded to a sublane-tile multiple
SLP  = SENTS * LPAD              # 96 flat rows fed to the conv stage

assert LPAD % 8 == 0 and LPAD >= SEQLEN and (LPAD & (LPAD - 1)) == 0
assert (HIDDEN & (HIDDEN - 1)) == 0   # power of two -> bitwise gate mask


# ----------------------------- Pallas kernel --------------------------------
def paracnn_kernel(tok_ref, ecw_ref, cb_ref, wih_ref, whh_ref, b_ref,
                   ow_ref, ob_ref, o_ref):
    S, C, H, K = SENTS, OUT_CH, HIDDEN, KSIZE

    # ---- embedding + Conv2d((K, D)) folded into per-tap row-select matmuls ----
    # ecw holds emb_cw = embedding @ conv_w, laid out (VOCAB, K*C).
    # tok column k holds the token id at flat position r+k (taps pre-shifted),
    # so  conv_preact[r, c] = sum_k emb_cw[tok[r, k], k*C + c].
    ids = tok_ref[...]                                              # (SLP, K) int32
    viota = lax.broadcasted_iota(jnp.int32, (SLP, VOCAB), 1)
    ecw = ecw_ref[...]                                              # (VOCAB, K*C)
    acc = None
    for k in range(K):
        oh = (ids[:, k:k + 1] == viota).astype(jnp.float32)         # (SLP, VOCAB)
        part = jnp.dot(oh, ecw[:, k * C:(k + 1) * C],
                       preferred_element_type=jnp.float32)          # exact row select
        acc = part if acc is None else acc + part
    scores = jnp.maximum(acc + cb_ref[...], 0.0)                    # + bias, ReLU

    # mask conv positions that fall off the sentence (pos >= LOUT, incl. pad
    # rows); ReLU output >= 0, so zeroing them never changes the max-over-time.
    row = lax.broadcasted_iota(jnp.int32, (SLP, C), 0)
    scores = jnp.where((row & (LPAD - 1)) < LOUT, scores, 0.0)

    # max over time per sentence; LPAD=16 keeps this 3-D view sublane-aligned.
    feats = jnp.max(scores.reshape(S, LPAD, C), axis=1)             # (S, C)

    # ---- fused bidirectional single-layer LSTM over the sentence axis ----
    # Hoisted input projection (+ gate biases); gate columns interleaved:
    #   [i_f, i_b, f_f, f_b, g_f, g_b, o_f, o_b], each block of width H.
    xproj = jnp.dot(feats, wih_ref[...],
                    preferred_element_type=jnp.float32) + b_ref[...]   # (S, 8H)
    col = lax.broadcasted_iota(jnp.int32, (S, 8 * H), 1)
    is_fwd = (col & H) == 0                 # forward-gate columns (blocks 0,2,4,6)
    xproj_f = jnp.where(is_fwd, xproj, 0.0)
    xproj_b = xproj - xproj_f

    whh = whh_ref[...]                                              # (2H, 8H) block-diag
    h = jnp.zeros((1, 2 * H), jnp.float32)                          # [h_fwd | h_bwd]
    c = jnp.zeros((1, 2 * H), jnp.float32)
    hsum = jnp.zeros((1, 2 * H), jnp.float32)

    # TODO(synk): whh could be made MXU weight-stationary via pltpu.matmul_push_rhs /
    # matmul_acc_lhs / matmul_pop; kept as jnp.dot for lowering robustness (whh
    # stays VMEM/vreg-resident across the 6 statically-unrolled steps anyway).
    for t in range(S):   # static unroll; both directions advance each step
        # forward consumes sentence t, backward consumes sentence S-1-t
        xp = xproj_f[t:t + 1, :] + xproj_b[S - 1 - t:S - t, :]      # (1, 8H)
        g = jnp.dot(h, whh, preferred_element_type=jnp.float32) + xp
        sg = jax.nn.sigmoid(g)                                      # one EUP region for i,f,o
        i_g = sg[:, 0:2 * H]
        f_g = sg[:, 2 * H:4 * H]
        g_g = jnp.tanh(g[:, 4 * H:6 * H])
        o_g = sg[:, 6 * H:8 * H]
        c = f_g * c + i_g * g_g
        h = o_g * jnp.tanh(c)
        hsum = hsum + h

    # torch.mean(x, 0): mean over time of [h_fwd_t, h_bwd_t]  -> (1, 2H)
    mean = hsum * (1.0 / S)

    # output_linear
    o_ref[...] = jnp.dot(mean, ow_ref[...],
                         preferred_element_type=jnp.float32) + ob_ref[...]


# ------------------------- one-time weight packing ----------------------------
def pack_params(params):
    """Pack PyTorch-layout weights into the kernel layout.  Called ONCE at init
    (hoisted off the per-call forward path, per the perf review)."""
    H, C, D = HIDDEN, OUT_CH, EMBED_DIM

    # Fold embedding @ conv weight: emb_cw[v, k*C + c] = sum_d emb[v,d]*conv_w[c,0,k,d]
    emb = params["embedding"].astype(jnp.float32)                               # (V, D)
    cw = jnp.transpose(params["conv_w"][:, 0], (2, 1, 0)).reshape(D, KSIZE * C) # (D, K*C)
    emb_cw = jnp.dot(emb, cw, precision=lax.Precision.HIGHEST)                  # exact f32 fold
    cb = params["conv_b"][None, :].astype(jnp.float32)                          # (1, C)

    def gate_blocks(w):     # w: (rows, 4H) -> 4 x (rows, H), PyTorch order i,f,g,o
        return [w[:, k * H:(k + 1) * H] for k in range(4)]

    wih_f_g = gate_blocks(params["wih_f"].T)                        # (C, H) blocks
    wih_b_g = gate_blocks(params["wih_b"].T)
    whh_f_g = gate_blocks(params["whh_f"].T)                        # (H, H) blocks
    whh_b_g = gate_blocks(params["whh_b"].T)
    bf = params["bih_f"] + params["bhh_f"]
    bb = params["bih_b"] + params["bhh_b"]
    bf_g = [bf[k * H:(k + 1) * H] for k in range(4)]
    bb_g = [bb[k * H:(k + 1) * H] for k in range(4)]

    # Interleaved gate layout [i_f, i_b, f_f, f_b, g_f, g_b, o_f, o_b]
    wih_cat = jnp.concatenate(
        [blk for k in range(4) for blk in (wih_f_g[k], wih_b_g[k])], axis=1)    # (C, 8H)
    zH = jnp.zeros((H, H), jnp.float32)
    whh_top = jnp.concatenate(
        [blk for k in range(4) for blk in (whh_f_g[k], zH)], axis=1)            # (H, 8H)
    whh_bot = jnp.concatenate(
        [blk for k in range(4) for blk in (zH, whh_b_g[k])], axis=1)            # (H, 8H)
    whh_cat = jnp.concatenate([whh_top, whh_bot], axis=0)                       # (2H, 8H)
    b_cat = jnp.concatenate(
        [blk for k in range(4) for blk in (bf_g[k], bb_g[k])])[None, :]         # (1, 8H)

    ow = params["out_w"].T.astype(jnp.float32)                                  # (2H, label)
    ob = params["out_b"][None, :].astype(jnp.float32)                           # (1, label)

    return dict(emb_cw=emb_cw, cb=cb, wih=wih_cat, whh=whh_cat,
                b=b_cat, ow=ow, ob=ob)


# ----------------------------- wrapper / glue --------------------------------
def _prep_tokens(tokens):
    """(L, S) token ids -> (S*LPAD, K) int32 where column k holds the token id
    at flat position r+k (conv taps pre-shifted; no in-kernel roll/shifted add)."""
    t = jnp.transpose(tokens).astype(jnp.int32)                                 # (S, L)
    pad = jnp.full((SENTS, LPAD - SEQLEN), PAD_IDX, jnp.int32)
    flat = jnp.concatenate([t, pad], axis=1).reshape(SENTS * LPAD)              # (SLP,)
    cols = [flat]
    for k in range(1, KSIZE):
        cols.append(jnp.concatenate([flat[k:], jnp.full((k,), PAD_IDX, jnp.int32)]))
    return jnp.stack(cols, axis=1)                                              # (SLP, K)


@jax.jit
def _forward_impl(packed, tokens):
    tok3 = _prep_tokens(tokens)
    vmem = pl.BlockSpec(memory_space=pltpu.MemorySpace.VMEM)
    return pl.pallas_call(
        paracnn_kernel,
        out_shape=jax.ShapeDtypeStruct((1, LABEL_SIZE), jnp.float32),
        in_specs=[vmem] * 8,
        out_specs=vmem,
    )(tok3, packed["emb_cw"], packed["cb"], packed["wih"], packed["whh"],
      packed["b"], packed["ow"], packed["ob"])


def my_para_cnn_forward(packed, inputs, inputs_lengths=None):
    # The reference module computes self.conv on every paragraph but only
    # all_x[0] reaches the LSTM/head; the other conv outputs are dead values,
    # so only inputs[0] is processed.  inputs_lengths is unused (as in PyTorch).
    # nn.Dropout is eval-mode identity.
    # TODO(synk): training-mode stochastic dropout not modelled.
    del inputs_lengths
    return _forward_impl(packed, inputs[0])


# ---------------------------- parameter init ---------------------------------
def init_params(key):
    ks = jax.random.split(key, 12)

    def u(k, shape, bound):
        return jax.random.uniform(k, shape, jnp.float32, -bound, bound)

    emb = jax.random.normal(ks[0], (VOCAB, EMBED_DIM), jnp.float32) * 0.1
    emb = emb.at[PAD_IDX].set(0.0)                           # padding_idx row = 0

    fan_conv = IN_CHANNELS * KSIZE * EMBED_DIM
    conv_w = u(ks[1], (OUT_CH, IN_CHANNELS, KSIZE, EMBED_DIM), 1.0 / math.sqrt(fan_conv))
    conv_b = u(ks[2], (OUT_CH,), 1.0 / math.sqrt(fan_conv))

    bnd = 1.0 / math.sqrt(HIDDEN)
    wih_f = u(ks[3], (4 * HIDDEN, OUT_CH), bnd)
    whh_f = u(ks[4], (4 * HIDDEN, HIDDEN), bnd)
    bih_f = u(ks[5], (4 * HIDDEN,), bnd)
    bhh_f = u(ks[6], (4 * HIDDEN,), bnd)
    wih_b = u(ks[7], (4 * HIDDEN, OUT_CH), bnd)
    whh_b = u(ks[8], (4 * HIDDEN, HIDDEN), bnd)
    bih_b = u(ks[9], (4 * HIDDEN,), bnd)
    bhh_b = u(ks[10], (4 * HIDDEN,), bnd)

    bnd_o = 1.0 / math.sqrt(2 * HIDDEN)
    out_w = u(ks[11], (LABEL_SIZE, 2 * HIDDEN), bnd_o)
    out_b = jnp.zeros((LABEL_SIZE,), jnp.float32)

    return dict(embedding=emb, conv_w=conv_w, conv_b=conv_b,
                wih_f=wih_f, whh_f=whh_f, bih_f=bih_f, bhh_f=bhh_f,
                wih_b=wih_b, whh_b=whh_b, bih_b=bih_b, bhh_b=bhh_b,
                out_w=out_w, out_b=out_b)


# --------------------------- pure-JAX reference ------------------------------
def reference_forward(params, inputs):
    tokens = inputs[0]
    x = tokens.T
    e = jnp.take(params["embedding"], x, axis=0).astype(jnp.float32)   # (S, L, D)
    S, L, D = e.shape
    Lout = L - KSIZE + 1
    cols = jnp.concatenate([e[:, dk:dk + Lout, :] for dk in range(KSIZE)], axis=-1)
    cw = params["conv_w"].reshape(OUT_CH, KSIZE * EMBED_DIM)
    scores = jnp.einsum("slk,ck->slc", cols, cw) + params["conv_b"]
    feats = jnp.max(jax.nn.relu(scores), axis=1)                        # (S, C)

    H = HIDDEN

    def cell(x_t, h, c, wih, whh, b):
        g = jnp.dot(x_t, wih.T) + jnp.dot(h, whh.T) + b
        i = jax.nn.sigmoid(g[:, 0:H])
        f = jax.nn.sigmoid(g[:, H:2 * H])
        gg = jnp.tanh(g[:, 2 * H:3 * H])
        o = jax.nn.sigmoid(g[:, 3 * H:4 * H])
        c = f * c + i * gg
        h = o * jnp.tanh(c)
        return h, c

    b_f = (params["bih_f"] + params["bhh_f"])[None, :]
    b_b = (params["bih_b"] + params["bhh_b"])[None, :]
    zeros = jnp.zeros((1, H), jnp.float32)

    h, c = zeros, zeros
    h_fwd = []
    for t in range(S):
        h, c = cell(feats[t:t + 1], h, c, params["wih_f"], params["whh_f"], b_f)
        h_fwd.append(h)
    h, c = zeros, zeros
    h_bwd = [None] * S
    for t in range(S - 1, -1, -1):
        h, c = cell(feats[t:t + 1], h, c, params["wih_b"], params["whh_b"], b_b)
        h_bwd[t] = h
    outs = jnp.concatenate([jnp.concatenate([hf, hb], axis=-1)
                            for hf, hb in zip(h_fwd, h_bwd)], axis=0)   # (S, 2H)
    mean = jnp.mean(outs, axis=0, keepdims=True)                        # (1, 2H)
    return jnp.dot(mean, params["out_w"].T) + params["out_b"][None, :]


# ---------------------------------- main --------------------------------------
if __name__ == "__main__":
    key = jax.random.PRNGKey(0)
    pkey, dkey = jax.random.split(key)
    params = init_params(pkey)
    packed = pack_params(params)      # one-time packing (hoisted out of forward)

    tokens = jax.random.randint(dkey, (SEQLEN, SENTS), 0, VOCAB, dtype=jnp.int32)
    inputs = [tokens]                                       # list of paragraphs
    inputs_lengths = jnp.full((SENTS,), SEQLEN, jnp.int32)  # unused, as in PyTorch

    out = my_para_cnn_forward(packed, inputs, inputs_lengths)
    out = jax.block_until_ready(out)

    ref = reference_forward(params, inputs)
    np.testing.assert_allclose(np.asarray(out), np.asarray(ref), rtol=5e-3, atol=5e-3)
    assert out.shape == (1, LABEL_SIZE)
    print("KERNEL_OK")
</pallas_src>

<mosaic_0001>
module attributes {stable_mosaic.version = 11 : i64} {
  func.func @paracnn_kernel(%arg0: memref<96x3xi32, #tpu.memory_space<vmem>>, %arg1: memref<50x48xf32, #tpu.memory_space<vmem>>, %arg2: memref<1x16xf32, #tpu.memory_space<vmem>>, %arg3: memref<16x256xf32, #tpu.memory_space<vmem>>, %arg4: memref<64x256xf32, #tpu.memory_space<vmem>>, %arg5: memref<1x256xf32, #tpu.memory_space<vmem>>, %arg6: memref<64x4xf32, #tpu.memory_space<vmem>>, %arg7: memref<1x4xf32, #tpu.memory_space<vmem>>, %arg8: memref<1x4xf32, #tpu.memory_space<vmem>>) attributes {dimension_semantics = [], scalar_prefetch = 0 : i64, scratch_operands = 0 : i64, tpu.core_type = #tpu.core_type<tc>} {
    %c0 = arith.constant 0 : index
    %c0_0 = arith.constant 0 : index
    %0 = vector.load %arg0[%c0, %c0_0] : memref<96x3xi32, #tpu.memory_space<vmem>>, vector<96x3xi32>
    %1 = tpu.iota {dimensions = array<i32: 1>} : vector<96x50xi32>
    %c0_1 = arith.constant 0 : index
    %c0_2 = arith.constant 0 : index
    %2 = vector.load %arg1[%c0_1, %c0_2] : memref<50x48xf32, #tpu.memory_space<vmem>>, vector<50x48xf32>
    %3 = vector.extract_strided_slice %0 {offsets = [0, 0], sizes = [96, 1], strides = [1, 1]} : vector<96x3xi32> to vector<96x1xi32>
    %4 = vector.broadcast %3 : vector<96x1xi32> to vector<96x50xi32>
    %5 = arith.cmpi eq, %4, %1 : vector<96x50xi32>
    %6 = arith.extui %5 : vector<96x50xi1> to vector<96x50xi32>
    %7 = arith.sitofp %6 : vector<96x50xi32> to vector<96x50xf32>
    %8 = vector.extract_strided_slice %2 {offsets = [0, 0], sizes = [50, 16], strides = [1, 1]} : vector<50x48xf32> to vector<50x16xf32>
    %cst = arith.constant dense<0.000000e+00> : vector<96x16xf32>
    %9 = tpu.matmul %7, %8, %cst {dimension_numbers = #tpu.dot_dimension_numbers<[1], [0], [0], [1], [0, 0, 1, 1], [], []>} : vector<96x50xf32>, vector<50x16xf32>, vector<96x16xf32> -> vector<96x16xf32>
    %10 = vector.extract_strided_slice %0 {offsets = [0, 1], sizes = [96, 1], strides = [1, 1]} : vector<96x3xi32> to vector<96x1xi32>
    %11 = vector.broadcast %10 : vector<96x1xi32> to vector<96x50xi32>
    %12 = arith.cmpi eq, %11, %1 : vector<96x50xi32>
    %13 = arith.extui %12 : vector<96x50xi1> to vector<96x50xi32>
    %14 = arith.sitofp %13 : vector<96x50xi32> to vector<96x50xf32>
    %15 = vector.extract_strided_slice %2 {offsets = [0, 16], sizes = [50, 16], strides = [1, 1]} : vector<50x48xf32> to vector<50x16xf32>
    %cst_3 = arith.constant dense<0.000000e+00> : vector<96x16xf32>
    %16 = tpu.matmul %14, %15, %cst_3 {dimension_numbers = #tpu.dot_dimension_numbers<[1], [0], [0], [1], [0, 0, 1, 1], [], []>} : vector<96x50xf32>, vector<50x16xf32>, vector<96x16xf32> -> vector<96x16xf32>
    %17 = arith.addf %9, %16 : vector<96x16xf32>
    %18 = vector.extract_strided_slice %0 {offsets = [0, 2], sizes = [96, 1], strides = [1, 1]} : vector<96x3xi32> to vector<96x1xi32>
    %19 = vector.broadcast %18 : vector<96x1xi32> to vector<96x50xi32>
    %20 = arith.cmpi eq, %19, %1 : vector<96x50xi32>
    %21 = arith.extui %20 : vector<96x50xi1> to vector<96x50xi32>
    %22 = arith.sitofp %21 : vector<96x50xi32> to vector<96x50xf32>
    %23 = vector.extract_strided_slice %2 {offsets = [0, 32], sizes = [50, 16], strides = [1, 1]} : vector<50x48xf32> to vector<50x16xf32>
    %cst_4 = arith.constant dense<0.000000e+00> : vector<96x16xf32>
    %24 = tpu.matmul %22, %23, %cst_4 {dimension_numbers = #tpu.dot_dimension_numbers<[1], [0], [0], [1], [0, 0, 1, 1], [], []>} : vector<96x50xf32>, vector<50x16xf32>, vector<96x16xf32> -> vector<96x16xf32>
    %25 = arith.addf %17, %24 : vector<96x16xf32>
    %c0_5 = arith.constant 0 : index
    %c0_6 = arith.constant 0 : index
    %26 = vector.load %arg2[%c0_5, %c0_6] : memref<1x16xf32, #tpu.memory_space<vmem>>, vector<1x16xf32>
    %27 = vector.broadcast %26 : vector<1x16xf32> to vector<96x16xf32>
    %28 = arith.addf %25, %27 : vector<96x16xf32>
    %cst_7 = arith.constant 0.000000e+00 : f32
    %29 = vector.broadcast %cst_7 : f32 to vector<96x16xf32>
    %30 = arith.maximumf %28, %29 : vector<96x16xf32>
    %31 = tpu.iota {dimensions = array<i32: 0>} : vector<96x16xi32>
    %c15_i32 = arith.constant 15 : i32
    %32 = vector.broadcast %c15_i32 : i32 to vector<96x16xi32>
    %33 = arith.andi %31, %32 : vector<96x16xi32>
    %c10_i32 = arith.constant 10 : i32
    %34 = vector.broadcast %c10_i32 : i32 to vector<96x16xi32>
    %35 = arith.cmpi slt, %33, %34 : vector<96x16xi32>
    %cst_8 = arith.constant 0.000000e+00 : f32
    %36 = vector.broadcast %cst_8 : f32 to vector<96x16xf32>
    %37 = arith.select %35, %30, %36 : vector<96x16xi1>, vector<96x16xf32>
    %38 = vector.shape_cast %37 : vector<96x16xf32> to vector<6x16x16xf32>
    %cst_9 = arith.constant dense<0xFF800000> : vector<6x16xf32>
    %39 = vector.multi_reduction <maximumf>, %38, %cst_9 [1] : vector<6x16x16xf32> to vector<6x16xf32>
    %c0_10 = arith.constant 0 : index
    %c0_11 = arith.constant 0 : index
    %40 = vector.load %arg3[%c0_10, %c0_11] : memref<16x256xf32, #tpu.memory_space<vmem>>, vector<16x256xf32>
    %cst_12 = arith.constant dense<0.000000e+00> : vector<6x256xf32>
    %41 = tpu.matmul %39, %40, %cst_12 {dimension_numbers = #tpu.dot_dimension_numbers<[1], [0], [0], [1], [0, 0, 1, 1], [], []>} : vector<6x16xf32>, vector<16x256xf32>, vector<6x256xf32> -> vector<6x256xf32>
    %c0_13 = arith.constant 0 : index
    %c0_14 = arith.constant 0 : index
    %42 = vector.load %arg5[%c0_13, %c0_14] : memref<1x256xf32, #tpu.memory_space<vmem>>, vector<1x256xf32>
    %43 = vector.broadcast %42 : vector<1x256xf32> to vector<6x256xf32>
    %44 = arith.addf %41, %43 : vector<6x256xf32>
    %45 = tpu.iota {dimensions = array<i32: 1>} : vector<6x256xi32>
    %c32_i32 = arith.constant 32 : i32
    %46 = vector.broadcast %c32_i32 : i32 to vector<6x256xi32>
    %47 = arith.andi %45, %46 : vector<6x256xi32>
    %c0_i32 = arith.constant 0 : i32
    %48 = vector.broadcast %c0_i32 : i32 to vector<6x256xi32>
    %49 = arith.cmpi eq, %47, %48 : vector<6x256xi32>
    %cst_15 = arith.constant 0.000000e+00 : f32
    %50 = vector.broadcast %cst_15 : f32 to vector<6x256xf32>
    %51 = arith.select %49, %44, %50 : vector<6x256xi1>, vector<6x256xf32>
    %52 = arith.subf %44, %51 : vector<6x256xf32>
    %c0_16 = arith.constant 0 : index
    %c0_17 = arith.constant 0 : index
    %53 = vector.load %arg4[%c0_16, %c0_17] : memref<64x256xf32, #tpu.memory_space<vmem>>, vector<64x256xf32>
    %cst_18 = arith.constant 0.000000e+00 : f32
    %54 = vector.broadcast %cst_18 : f32 to vector<1x64xf32>
    %cst_19 = arith.constant 0.000000e+00 : f32
    %55 = vector.broadcast %cst_19 : f32 to vector<1x64xf32>
    %cst_20 = arith.constant 0.000000e+00 : f32
    %56 = vector.broadcast %cst_20 : f32 to vector<1x64xf32>
    %57 = vector.extract_strided_slice %51 {offsets = [0, 0], sizes = [1, 256], strides = [1, 1]} : vector<6x256xf32> to vector<1x256xf32>
    %58 = vector.extract_strided_slice %52 {offsets = [5, 0], sizes = [1, 256], strides = [1, 1]} : vector<6x256xf32> to vector<1x256xf32>
    %59 = arith.addf %57, %58 : vector<1x256xf32>
    %cst_21 = arith.constant dense<0.000000e+00> : vector<1x256xf32>
    %60 = tpu.matmul %54, %53, %cst_21 {dimension_numbers = #tpu.dot_dimension_numbers<[1], [0], [0], [1], [0, 0, 1, 1], [], []>} : vector<1x64xf32>, vector<64x256xf32>, vector<1x256xf32> -> vector<1x256xf32>
    %61 = arith.addf %60, %59 : vector<1x256xf32>
    %62 = arith.negf %61 : vector<1x256xf32>
    %63 = math.exp %62 : vector<1x256xf32>
    %cst_22 = arith.constant 1.000000e+00 : f32
    %64 = vector.broadcast %cst_22 : f32 to vector<1x256xf32>
    %65 = arith.addf %64, %63 : vector<1x256xf32>
    %66 = arith.divf %64, %65 : vector<1x256xf32>
    %67 = vector.extract_strided_slice %66 {offsets = [0, 0], sizes = [1, 64], strides = [1, 1]} : vector<1x256xf32> to vector<1x64xf32>
    %68 = vector.extract_strided_slice %66 {offsets = [0, 64], sizes = [1, 64], strides = [1, 1]} : vector<1x256xf32> to vector<1x64xf32>
    %69 = vector.extract_strided_slice %61 {offsets = [0, 128], sizes = [1, 64], strides = [1, 1]} : vector<1x256xf32> to vector<1x64xf32>
    %70 = math.tanh %69 : vector<1x64xf32>
    %71 = vector.extract_strided_slice %66 {offsets = [0, 192], sizes = [1, 64], strides = [1, 1]} : vector<1x256xf32> to vector<1x64xf32>
    %72 = arith.mulf %68, %55 : vector<1x64xf32>
    %73 = arith.mulf %67, %70 : vector<1x64xf32>
    %74 = arith.addf %72, %73 : vector<1x64xf32>
    %75 = math.tanh %74 : vector<1x64xf32>
    %76 = arith.mulf %71, %75 : vector<1x64xf32>
    %77 = arith.addf %56, %76 : vector<1x64xf32>
    %78 = vector.extract_strided_slice %51 {offsets = [1, 0], sizes = [1, 256], strides = [1, 1]} : vector<6x256xf32> to vector<1x256xf32>
    %79 = vector.extract_strided_slice %52 {offsets = [4, 0], sizes = [1, 256], strides = [1, 1]} : vector<6x256xf32> to vector<1x256xf32>
    %80 = arith.addf %78, %79 : vector<1x256xf32>
    %cst_23 = arith.constant dense<0.000000e+00> : vector<1x256xf32>
    %81 = tpu.matmul %76, %53, %cst_23 {dimension_numbers = #tpu.dot_dimension_numbers<[1], [0], [0], [1], [0, 0, 1, 1], [], []>} : vector<1x64xf32>, vector<64x256xf32>, vector<1x256xf32> -> vector<1x256xf32>
    %82 = arith.addf %81, %80 : vector<1x256xf32>
    %83 = arith.negf %82 : vector<1x256xf32>
    %84 = math.exp %83 : vector<1x256xf32>
    %cst_24 = arith.constant 1.000000e+00 : f32
    %85 = vector.broadcast %cst_24 : f32 to vector<1x256xf32>
    %86 = arith.addf %85, %84 : vector<1x256xf32>
    %87 = arith.divf %85, %86 : vector<1x256xf32>
    %88 = vector.extract_strided_slice %87 {offsets = [0, 0], sizes = [1, 64], strides = [1, 1]} : vector<1x256xf32> to vector<1x64xf32>
    %89 = vector.extract_strided_slice %87 {offsets = [0, 64], sizes = [1, 64], strides = [1, 1]} : vector<1x256xf32> to vector<1x64xf32>
    %90 = vector.extract_strided_slice %82 {offsets = [0, 128], sizes = [1, 64], strides = [1, 1]} : vector<1x256xf32> to vector<1x64xf32>
    %91 = math.tanh %90 : vector<1x64xf32>
    %92 = vector.extract_strided_slice %87 {offsets = [0, 192], sizes = [1, 64], strides = [1, 1]} : vector<1x256xf32> to vector<1x64xf32>
    %93 = arith.mulf %89, %74 : vector<1x64xf32>
    %94 = arith.mulf %88, %91 : vector<1x64xf32>
    %95 = arith.addf %93, %94 : vector<1x64xf32>
    %96 = math.tanh %95 : vector<1x64xf32>
    %97 = arith.mulf %92, %96 : vector<1x64xf32>
    %98 = arith.addf %77, %97 : vector<1x64xf32>
    %99 = vector.extract_strided_slice %51 {offsets = [2, 0], sizes = [1, 256], strides = [1, 1]} : vector<6x256xf32> to vector<1x256xf32>
    %100 = vector.extract_strided_slice %52 {offsets = [3, 0], sizes = [1, 256], strides = [1, 1]} : vector<6x256xf32> to vector<1x256xf32>
    %101 = arith.addf %99, %100 : vector<1x256xf32>
    %cst_25 = arith.constant dense<0.000000e+00> : vector<1x256xf32>
    %102 = tpu.matmul %97, %53, %cst_25 {dimension_numbers = #tpu.dot_dimension_numbers<[1], [0], [0], [1], [0, 0, 1, 1], [], []>} : vector<1x64xf32>, vector<64x256xf32>, vector<1x256xf32> -> vector<1x256xf32>
    %103 = arith.addf %102, %101 : vector<1x256xf32>
    %104 = arith.negf %103 : vector<1x256xf32>
    %105 = math.exp %104 : vector<1x256xf32>
    %cst_26 = arith.constant 1.000000e+00 : f32
    %106 = vector.broadcast %cst_26 : f32 to vector<1x256xf32>
    %107 = arith.addf %106, %105 : vector<1x256xf32>
    %108 = arith.divf %106, %107 : vector<1x256xf32>
    %109 = vector.extract_strided_slice %108 {offsets = [0, 0], sizes = [1, 64], strides = [1, 1]} : vector<1x256xf32> to vector<1x64xf32>
    %110 = vector.extract_strided_slice %108 {offsets = [0, 64], sizes = [1, 64], strides = [1, 1]} : vector<1x256xf32> to vector<1x64xf32>
    %111 = vector.extract_strided_slice %103 {offsets = [0, 128], sizes = [1, 64], strides = [1, 1]} : vector<1x256xf32> to vector<1x64xf32>
    %112 = math.tanh %111 : vector<1x64xf32>
    %113 = vector.extract_strided_slice %108 {offsets = [0, 192], sizes = [1, 64], strides = [1, 1]} : vector<1x256xf32> to vector<1x64xf32>
    %114 = arith.mulf %110, %95 : vector<1x64xf32>
    %115 = arith.mulf %109, %112 : vector<1x64xf32>
    %116 = arith.addf %114, %115 : vector<1x64xf32>
    %117 = math.tanh %116 : vector<1x64xf32>
    %118 = arith.mulf %113, %117 : vector<1x64xf32>
    %119 = arith.addf %98, %118 : vector<1x64xf32>
    %120 = vector.extract_strided_slice %51 {offsets = [3, 0], sizes = [1, 256], strides = [1, 1]} : vector<6x256xf32> to vector<1x256xf32>
    %121 = vector.extract_strided_slice %52 {offsets = [2, 0], sizes = [1, 256], strides = [1, 1]} : vector<6x256xf32> to vector<1x256xf32>
    %122 = arith.addf %120, %121 : vector<1x256xf32>
    %cst_27 = arith.constant dense<0.000000e+00> : vector<1x256xf32>
    %123 = tpu.matmul %118, %53, %cst_27 {dimension_numbers = #tpu.dot_dimension_numbers<[1], [0], [0], [1], [0, 0, 1, 1], [], []>} : vector<1x64xf32>, vector<64x256xf32>, vector<1x256xf32> -> vector<1x256xf32>
    %124 = arith.addf %123, %122 : vector<1x256xf32>
    %125 = arith.negf %124 : vector<1x256xf32>
    %126 = math.exp %125 : vector<1x256xf32>
    %cst_28 = arith.constant 1.000000e+00 : f32
    %127 = vector.broadcast %cst_28 : f32 to vector<1x256xf32>
    %128 = arith.addf %127, %126 : vector<1x256xf32>
    %129 = arith.divf %127, %128 : vector<1x256xf32>
    %130 = vector.extract_strided_slice %129 {offsets = [0, 0], sizes = [1, 64], strides = [1, 1]} : vector<1x256xf32> to vector<1x64xf32>
    %131 = vector.extract_strided_slice %129 {offsets = [0, 64], sizes = [1, 64], strides = [1, 1]} : vector<1x256xf32> to vector<1x64xf32>
    %132 = vector.extract_strided_slice %124 {offsets = [0, 128], sizes = [1, 64], strides = [1, 1]} : vector<1x256xf32> to vector<1x64xf32>
    %133 = math.tanh %132 : vector<1x64xf32>
    %134 = vector.extract_strided_slice %129 {offsets = [0, 192], sizes = [1, 64], strides = [1, 1]} : vector<1x256xf32> to vector<1x64xf32>
    %135 = arith.mulf %131, %116 : vector<1x64xf32>
    %136 = arith.mulf %130, %133 : vector<1x64xf32>
    %137 = arith.addf %135, %136 : vector<1x64xf32>
    %138 = math.tanh %137 : vector<1x64xf32>
    %139 = arith.mulf %134, %138 : vector<1x64xf32>
    %140 = arith.addf %119, %139 : vector<1x64xf32>
    %141 = vector.extract_strided_slice %51 {offsets = [4, 0], sizes = [1, 256], strides = [1, 1]} : vector<6x256xf32> to vector<1x256xf32>
    %142 = vector.extract_strided_slice %52 {offsets = [1, 0], sizes = [1, 256], strides = [1, 1]} : vector<6x256xf32> to vector<1x256xf32>
    %143 = arith.addf %141, %142 : vector<1x256xf32>
    %cst_29 = arith.constant dense<0.000000e+00> : vector<1x256xf32>
    %144 = tpu.matmul %139, %53, %cst_29 {dimension_numbers = #tpu.dot_dimension_numbers<[1], [0], [0], [1], [0, 0, 1, 1], [], []>} : vector<1x64xf32>, vector<64x256xf32>, vector<1x256xf32> -> vector<1x256xf32>
    %145 = arith.addf %144, %143 : vector<1x256xf32>
    %146 = arith.negf %145 : vector<1x256xf32>
    %147 = math.exp %146 : vector<1x256xf32>
    %cst_30 = arith.constant 1.000000e+00 : f32
    %148 = vector.broadcast %cst_30 : f32 to vector<1x256xf32>
    %149 = arith.addf %148, %147 : vector<1x256xf32>
    %150 = arith.divf %148, %149 : vector<1x256xf32>
    %151 = vector.extract_strided_slice %150 {offsets = [0, 0], sizes = [1, 64], strides = [1, 1]} : vector<1x256xf32> to vector<1x64xf32>
    %152 = vector.extract_strided_slice %150 {offsets = [0, 64], sizes = [1, 64], strides = [1, 1]} : vector<1x256xf32> to vector<1x64xf32>
    %153 = vector.extract_strided_slice %145 {offsets = [0, 128], sizes = [1, 64], strides = [1, 1]} : vector<1x256xf32> to vector<1x64xf32>
    %154 = math.tanh %153 : vector<1x64xf32>
    %155 = vector.extract_strided_slice %150 {offsets = [0, 192], sizes = [1, 64], strides = [1, 1]} : vector<1x256xf32> to vector<1x64xf32>
    %156 = arith.mulf %152, %137 : vector<1x64xf32>
    %157 = arith.mulf %151, %154 : vector<1x64xf32>
    %158 = arith.addf %156, %157 : vector<1x64xf32>
    %159 = math.tanh %158 : vector<1x64xf32>
    %160 = arith.mulf %155, %159 : vector<1x64xf32>
    %161 = arith.addf %140, %160 : vector<1x64xf32>
    %162 = vector.extract_strided_slice %51 {offsets = [5, 0], sizes = [1, 256], strides = [1, 1]} : vector<6x256xf32> to vector<1x256xf32>
    %163 = vector.extract_strided_slice %52 {offsets = [0, 0], sizes = [1, 256], strides = [1, 1]} : vector<6x256xf32> to vector<1x256xf32>
    %164 = arith.addf %162, %163 : vector<1x256xf32>
    %cst_31 = arith.constant dense<0.000000e+00> : vector<1x256xf32>
    %165 = tpu.matmul %160, %53, %cst_31 {dimension_numbers = #tpu.dot_dimension_numbers<[1], [0], [0], [1], [0, 0, 1, 1], [], []>} : vector<1x64xf32>, vector<64x256xf32>, vector<1x256xf32> -> vector<1x256xf32>
    %166 = arith.addf %165, %164 : vector<1x256xf32>
    %167 = arith.negf %166 : vector<1x256xf32>
    %168 = math.exp %167 : vector<1x256xf32>
    %cst_32 = arith.constant 1.000000e+00 : f32
    %169 = vector.broadcast %cst_32 : f32 to vector<1x256xf32>
    %170 = arith.addf %169, %168 : vector<1x256xf32>
    %171 = arith.divf %169, %170 : vector<1x256xf32>
    %172 = vector.extract_strided_slice %171 {offsets = [0, 0], sizes = [1, 64], strides = [1, 1]} : vector<1x256xf32> to vector<1x64xf32>
    %173 = vector.extract_strided_slice %171 {offsets = [0, 64], sizes = [1, 64], strides = [1, 1]} : vector<1x256xf32> to vector<1x64xf32>
    %174 = vector.extract_strided_slice %166 {offsets = [0, 128], sizes = [1, 64], strides = [1, 1]} : vector<1x256xf32> to vector<1x64xf32>
    %175 = math.tanh %174 : vector<1x64xf32>
    %176 = vector.extract_strided_slice %171 {offsets = [0, 192], sizes = [1, 64], strides = [1, 1]} : vector<1x256xf32> to vector<1x64xf32>
    %177 = arith.mulf %173, %158 : vector<1x64xf32>
    %178 = arith.mulf %172, %175 : vector<1x64xf32>
    %179 = arith.addf %177, %178 : vector<1x64xf32>
    %180 = math.tanh %179 : vector<1x64xf32>
    %181 = arith.mulf %176, %180 : vector<1x64xf32>
    %182 = arith.addf %161, %181 : vector<1x64xf32>
    %cst_33 = arith.constant 0.166666672 : f32
    %183 = vector.broadcast %cst_33 : f32 to vector<1x64xf32>
    %184 = arith.mulf %182, %183 : vector<1x64xf32>
    %c0_34 = arith.constant 0 : index
    %c0_35 = arith.constant 0 : index
    %185 = vector.load %arg6[%c0_34, %c0_35] : memref<64x4xf32, #tpu.memory_space<vmem>>, vector<64x4xf32>
    %cst_36 = arith.constant dense<0.000000e+00> : vector<1x4xf32>
    %186 = tpu.matmul %184, %185, %cst_36 {dimension_numbers = #tpu.dot_dimension_numbers<[1], [0], [0], [1], [0, 0, 1, 1], [], []>} : vector<1x64xf32>, vector<64x4xf32>, vector<1x4xf32> -> vector<1x4xf32>
    %c0_37 = arith.constant 0 : index
    %c0_38 = arith.constant 0 : index
    %187 = vector.load %arg7[%c0_37, %c0_38] : memref<1x4xf32, #tpu.memory_space<vmem>>, vector<1x4xf32>
    %188 = arith.addf %186, %187 : vector<1x4xf32>
    %c0_39 = arith.constant 0 : index
    %c0_40 = arith.constant 0 : index
    %189 = vector.load %arg8[%c0_39, %c0_40] : memref<1x4xf32, #tpu.memory_space<vmem>>, vector<1x4xf32>
    tpu.vector_store %arg8[%c0_39, %c0_40], %188 {strides = array<i32>} : memref<1x4xf32, #tpu.memory_space<vmem>>, vector<1x4xf32>,
    return
  }
}

</mosaic_0001>

<llo_original>
// kernel: _forward_impl.1
$region0: #{_forward_impl.1}
  #allocation0 [shape = 'u32[]', space=smem, size = 0x4, offset = 0x4, fixed_abs, tag = 'smem constant byte address 0x4 - core index']
  #allocation1 [shape = 'u32[144,128]{1,0:T(1,128)}', space=vmem, size = 0x12000, scoped, tag = 'internal scratch']
  %s0 = inlined_call_operand.vmem [shape: s32[96,3], index: 0, kind: input, shape index: {}]
  %s1 = inlined_call_operand.vmem [shape: f32[50,48], index: 1, kind: input, shape index: {}]
  %s2 = inlined_call_operand.vmem [shape: f32[1,16], index: 2, kind: input, shape index: {}]
  %s3 = inlined_call_operand.vmem [shape: f32[16,256], index: 3, kind: input, shape index: {}]
  %s4 = inlined_call_operand.vmem [shape: f32[64,256], index: 4, kind: input, shape index: {}]
  %s5 = inlined_call_operand.vmem [shape: f32[1,256], index: 5, kind: input, shape index: {}]
  %s6 = inlined_call_operand.vmem [shape: f32[64,4], index: 6, kind: input, shape index: {}]
  %s7 = inlined_call_operand.vmem [shape: f32[1,4], index: 7, kind: input, shape index: {}]
  %s8 = inlined_call_operand.hbm [shape: f32[1,4], index: 8, kind: output, shape index: {}]
  %s9 = sld [smem:[#allocation0]]
  $region42: #{_forward_impl.1} parent=0
    _
  %s11 = ssub.s32 1, %s9
  %s12 = scalar_select 0, %s11, %s9
  $region1: #{_forward_impl.1} parent=0
    #allocation2 [shape = 'u8[512]{0}', space=vmem, size = 0x400, scoped, tag = 'output window, operand 0, single buffered']
    #allocation3 [shape = 's32[1]{0}', space=sflag, size = 0x4, scoped, tag = 'scoped memory for _forward_impl.1']
    %13 = vsyncpa [#allocation3], 0
    // Predicated region
    $region2: #{_forward_impl.1} parent=1 // pred_check
      _
    $region3: #{_forward_impl.1} parent=1 // pred_check_branch
      %15 = sbr.rel (0) target = $region5
    $region4: #{_forward_impl.1} parent=1 // pred_region
      _
    $region5: #{_forward_impl.1} parent=1 // pred_fallthru
      _
    // Predicated region
    $region6: #{_forward_impl.1} parent=1 // pred_check
      _
    $region7: #{_forward_impl.1} parent=1 // pred_check_branch
      %17 = sbr.rel (0) target = $region9
    $region8: #{_forward_impl.1} parent=1 // pred_region
      _
    $region9: #{_forward_impl.1} parent=1 // pred_fallthru
      _
    // Predicated region
    $region10: #{_forward_impl.1} parent=1 // pred_check
      _
    $region11: #{_forward_impl.1} parent=1 // pred_check_branch
      %19 = sbr.rel (0) target = $region13
    $region12: #{_forward_impl.1} parent=1 // pred_region
      _
    $region13: #{_forward_impl.1} parent=1 // pred_fallthru
      _
    // Predicated region
    $region14: #{_forward_impl.1} parent=1 // pred_check
      _
    $region15: #{_forward_impl.1} parent=1 // pred_check_branch
      %21 = sbr.rel (0) target = $region17
    $region16: #{_forward_impl.1} parent=1 // pred_region
      _
    $region17: #{_forward_impl.1} parent=1 // pred_fallthru
      _
    // Predicated region
    $region18: #{_forward_impl.1} parent=1 // pred_check
      _
    $region19: #{_forward_impl.1} parent=1 // pred_check_branch
      %23 = sbr.rel (0) target = $region21
    $region20: #{_forward_impl.1} parent=1 // pred_region
      _
    $region21: #{_forward_impl.1} parent=1 // pred_fallthru
      _
    // Predicated region
    $region22: #{_forward_impl.1} parent=1 // pred_check
      _
    $region23: #{_forward_impl.1} parent=1 // pred_check_branch
      %25 = sbr.rel (0) target = $region25
    $region24: #{_forward_impl.1} parent=1 // pred_region
      _
    $region25: #{_forward_impl.1} parent=1 // pred_fallthru
      _
    // Predicated region
    $region26: #{_forward_impl.1} parent=1 // pred_check
      _
    $region27: #{_forward_impl.1} parent=1 // pred_check_branch
      %27 = sbr.rel (0) target = $region29
    $region28: #{_forward_impl.1} parent=1 // pred_region
      _
    $region29: #{_forward_impl.1} parent=1 // pred_fallthru
      _
    // Predicated region
    $region30: #{_forward_impl.1} parent=1 // pred_check
      _
    $region31: #{_forward_impl.1} parent=1 // pred_check_branch
      %29 = sbr.rel (0) target = $region33
    $region32: #{_forward_impl.1} parent=1 // pred_region
      _
    $region33: #{_forward_impl.1} parent=1 // pred_fallthru
      _
    %v30 = vld [vmem:[%s0] sm:$0xff]
    %v31 = vld [vmem:[%s0 + $0x8] sm:$0xff]
    %v32 = vld [vmem:[%s0 + $0x10] sm:$0xff]
    %v33 = vld [vmem:[%s0 + $0x18] sm:$0xff]
    %v34 = vld [vmem:[%s0 + $0x20] sm:$0xff]
    %v35 = vld [vmem:[%s0 + $0x28] sm:$0xff]
    %v36 = vld [vmem:[%s0 + $0x30] sm:$0xff]
    %v37 = vld [vmem:[%s0 + $0x38] sm:$0xff]
    %v38 = vld [vmem:[%s0 + $0x40] sm:$0xff]
    %v39 = vld [vmem:[%s0 + $0x48] sm:$0xff]
    %v40 = vld [vmem:[%s0 + $0x50] sm:$0xff]
    %v41 = vld [vmem:[%s0 + $0x58] sm:$0xff]
    %v42 = vlaneseq
    %v43 = vand.u32 %v42, 127
    %v44 = vld [vmem:[%s1] sm:$0xff]
    %v45 = vld [vmem:[%s1 + $0x8] sm:$0xff]
    %v46 = vld [vmem:[%s1 + $0x10] sm:$0xff]
    %v47 = vld [vmem:[%s1 + $0x18] sm:$0xff]
    %v48 = vld [vmem:[%s1 + $0x20] sm:$0xff]
    %v49 = vld [vmem:[%s1 + $0x28] sm:$0xff]
    %v50 = vld [vmem:[%s1 + $0x30] sm:$0x3]
    %51 = vset.pattern.permute.xlu0 0
    %52 = vperm.xlu0 %51, %v30
    %v53 = vpop.permute.xlu0 %52
    %54 = vset.pattern.permute.xlu0 0
    %55 = vperm.xlu0 %54, %v31
    %v56 = vpop.permute.xlu0 %55
    %57 = vset.pattern.permute.xlu0 0
    %58 = vperm.xlu0 %57, %v32
    %v59 = vpop.permute.xlu0 %58
    %60 = vset.pattern.permute.xlu0 0
    %61 = vperm.xlu0 %60, %v33
    %v62 = vpop.permute.xlu0 %61
    %63 = vset.pattern.permute.xlu0 0
    %64 = vperm.xlu0 %63, %v34
    %v65 = vpop.permute.xlu0 %64
    %66 = vset.pattern.permute.xlu0 0
    %67 = vperm.xlu0 %66, %v35
    %v68 = vpop.permute.xlu0 %67
    %69 = vset.pattern.permute.xlu0 0
    %70 = vperm.xlu0 %69, %v36
    %v71 = vpop.permute.xlu0 %70
    %72 = vset.pattern.permute.xlu0 0
    %73 = vperm.xlu0 %72, %v37
    %v74 = vpop.permute.xlu0 %73
    %75 = vset.pattern.permute.xlu0 0
    %76 = vperm.xlu0 %75, %v38
    %v77 = vpop.permute.xlu0 %76
    %78 = vset.pattern.permute.xlu0 0
    %79 = vperm.xlu0 %78, %v39
    %v80 = vpop.permute.xlu0 %79
    %81 = vset.pattern.permute.xlu0 0
    %82 = vperm.xlu0 %81, %v40
    %v83 = vpop.permute.xlu0 %82
    %84 = vset.pattern.permute.xlu0 0
    %85 = vperm.xlu0 %84, %v41
    %v86 = vpop.permute.xlu0 %85
    %vm87 = vcmp.eq.s32.totalorder %v53, %v43
    %vm88 = vcmp.eq.s32.totalorder %v56, %v43
    %vm89 = vcmp.eq.s32.totalorder %v59, %v43
    %vm90 = vcmp.eq.s32.totalorder %v62, %v43
    %vm91 = vcmp.eq.s32.totalorder %v65, %v43
    %vm92 = vcmp.eq.s32.totalorder %v68, %v43
    %vm93 = vcmp.eq.s32.totalorder %v71, %v43
    %vm94 = vcmp.eq.s32.totalorder %v74, %v43
    %vm95 = vcmp.eq.s32.totalorder %v77, %v43
    %vm96 = vcmp.eq.s32.totalorder %v80, %v43
    %vm97 = vcmp.eq.s32.totalorder %v83, %v43
    %vm98 = vcmp.eq.s32.totalorder %v86, %v43
    %v99 = vsel %vm87, 1, 0
    %v100 = vsel %vm88, 1, 0
    %v101 = vsel %vm89, 1, 0
    %v102 = vsel %vm90, 1, 0
    %v103 = vsel %vm91, 1, 0
    %v104 = vsel %vm92, 1, 0
    %v105 = vsel %vm93, 1, 0
    %v106 = vsel %vm94, 1, 0
    %v107 = vsel %vm95, 1, 0
    %v108 = vsel %vm96, 1, 0
    %v109 = vsel %vm97, 1, 0
    %v110 = vsel %vm98, 1, 0
    %v111 = vcvt.s32.f32 %v99
    %v112 = vcvt.s32.f32 %v100
    %v113 = vcvt.s32.f32 %v101
    %v114 = vcvt.s32.f32 %v102
    %v115 = vcvt.s32.f32 %v103
    %v116 = vcvt.s32.f32 %v104
    %v117 = vcvt.s32.f32 %v105
    %v118 = vcvt.s32.f32 %v106
    %v119 = vcvt.s32.f32 %v107
    %v120 = vcvt.s32.f32 %v108
    %v121 = vcvt.s32.f32 %v109
    %v122 = vcvt.s32.f32 %v110
    %123 = vset.pattern.permute.xlu0 1
    %124 = vperm.xlu0 %123, %v30
    %v125 = vpop.permute.xlu0 %124
    %126 = vset.pattern.permute.xlu0 1
    %127 = vperm.xlu0 %126, %v31
    %v128 = vpop.permute.xlu0 %127
    %129 = vset.pattern.permute.xlu0 1
    %130 = vperm.xlu0 %129, %v32
    %v131 = vpop.permute.xlu0 %130
    %132 = vset.pattern.permute.xlu0 1
    %133 = vperm.xlu0 %132, %v33
    %v134 = vpop.permute.xlu0 %133
    %135 = vset.pattern.permute.xlu0 1
    %136 = vperm.xlu0 %135, %v34
    %v137 = vpop.permute.xlu0 %136
    %138 = vset.pattern.permute.xlu0 1
    %139 = vperm.xlu0 %138, %v35
    %v140 = vpop.permute.xlu0 %139
    %141 = vset.pattern.permute.xlu0 1
    %142 = vperm.xlu0 %141, %v36
    %v143 = vpop.permute.xlu0 %142
    %144 = vset.pattern.permute.xlu0 1
    %145 = vperm.xlu0 %144, %v37
    %v146 = vpop.permute.xlu0 %145
    %147 = vset.pattern.permute.xlu0 1
    %148 = vperm.xlu0 %147, %v38
    %v149 = vpop.permute.xlu0 %148
    %150 = vset.pattern.permute.xlu0 1
    %151 = vperm.xlu0 %150, %v39
    %v152 = vpop.permute.xlu0 %151
    %153 = vset.pattern.permute.xlu0 1
    %154 = vperm.xlu0 %153, %v40
    %v155 = vpop.permute.xlu0 %154
    %156 = vset.pattern.permute.xlu0 1
    %157 = vperm.xlu0 %156, %v41
    %v158 = vpop.permute.xlu0 %157
    %vm159 = vcmp.eq.s32.totalorder %v125, %v43
    %vm160 = vcmp.eq.s32.totalorder %v128, %v43
    %vm161 = vcmp.eq.s32.totalorder %v131, %v43
    %vm162 = vcmp.eq.s32.totalorder %v134, %v43
    %vm163 = vcmp.eq.s32.totalorder %v137, %v43
    %vm164 = vcmp.eq.s32.totalorder %v140, %v43
    %vm165 = vcmp.eq.s32.totalorder %v143, %v43
    %vm166 = vcmp.eq.s32.totalorder %v146, %v43
    %vm167 = vcmp.eq.s32.totalorder %v149, %v43
    %vm168 = vcmp.eq.s32.totalorder %v152, %v43
    %vm169 = vcmp.eq.s32.totalorder %v155, %v43
    %vm170 = vcmp.eq.s32.totalorder %v158, %v43
    %v171 = vsel %vm159, 1, 0
    %v172 = vsel %vm160, 1, 0
    %v173 = vsel %vm161, 1, 0
    %v174 = vsel %vm162, 1, 0
    %v175 = vsel %vm163, 1, 0
    %v176 = vsel %vm164, 1, 0
    %v177 = vsel %vm165, 1, 0
    %v178 = vsel %vm166, 1, 0
    %v179 = vsel %vm167, 1, 0
    %v180 = vsel %vm168, 1, 0
    %v181 = vsel %vm169, 1, 0
    %v182 = vsel %vm170, 1, 0
    %v183 = vcvt.s32.f32 %v171
    %v184 = vcvt.s32.f32 %v172
    %v185 = vcvt.s32.f32 %v173
    %v186 = vcvt.s32.f32 %v174
    %v187 = vcvt.s32.f32 %v175
    %v188 = vcvt.s32.f32 %v176
    %v189 = vcvt.s32.f32 %v177
    %v190 = vcvt.s32.f32 %v178
    %v191 = vcvt.s32.f32 %v179
    %v192 = vcvt.s32.f32 %v180
    %v193 = vcvt.s32.f32 %v181
    %v194 = vcvt.s32.f32 %v182
    %202 = vrot.lane.b32.xlu0 %v44, 112
    %v203 = vpop.permute.xlu0 %202
    %204 = vrot.lane.b32.xlu0 %v45, 112
    %v205 = vpop.permute.xlu0 %204
    %206 = vrot.lane.b32.xlu0 %v46, 112
    %v207 = vpop.permute.xlu0 %206
    %208 = vrot.lane.b32.xlu0 %v47, 112
    %v209 = vpop.permute.xlu0 %208
    %210 = vrot.lane.b32.xlu0 %v48, 112
    %v211 = vpop.permute.xlu0 %210
    %212 = vrot.lane.b32.xlu0 %v49, 112
    %v213 = vpop.permute.xlu0 %212
    %214 = vrot.lane.b32.xlu0 %v50, 112
    %v215 = vpop.permute.xlu0 %214
    %vm222 = vcmask 408576
    %v224 = vsel %vm222, %v183, 0
    %v227 = vsel %vm222, %v184, 0
    %v230 = vsel %vm222, %v185, 0
    %v233 = vsel %vm222, %v186, 0
    %v236 = vsel %vm222, %v187, 0
    %v239 = vsel %vm222, %v188, 0
    %v242 = vsel %vm222, %v189, 0
    %v245 = vsel %vm222, %v190, 0
    %v248 = vsel %vm222, %v191, 0
    %v251 = vsel %vm222, %v192, 0
    %v254 = vsel %vm222, %v193, 0
    %v257 = vsel %vm222, %v194, 0
    %vm259 = vcmask 1041408
    %v260 = vsel %vm259, %v215, 0
    %262 = vmatprep.subr.mxu0 0.0
    %263 = vmatpush1.msra.mxu0 0.0
    %264 = vmatprep.subr.mxu0 0.0
    %265 = vmatpush1.msra.mxu0 0.0
    %266 = vmatprep.subr.mxu0 0.0
    %267 = vmatpush1.msra.mxu0 0.0
    %268 = vmatprep.subr.mxu0 0.0
    %269 = vmatpush1.msra.mxu0 0.0
    %270 = vmatprep.subr.mxu0 0.0
    %271 = vmatpush1.msra.mxu0 0.0
    %272 = vmatprep.subr.mxu0 0.0
    %273 = vmatpush1.msra.mxu0 0.0
    %274 = vmatprep.subr.mxu0 0.0
    %275 = vmatpush1.msra.mxu0 0.0
    %276 = vmatprep.subr.mxu0 0.0
    %277 = vmatpush1.msra.mxu0 0.0
    %278 = vmatprep.subr.mxu0 0.0
    %279 = vmatpush1.msra.mxu0 0.0
    %280 = vmatprep.subr.mxu0 0.0
    %281 = vmatpush1.msra.mxu0 %v260
    %282 = vmatprep.subr.mxu0 0.0
    %283 = vmatpush1.msra.mxu0 %v213
    %284 = vmatprep.subr.mxu0 0.0
    %285 = vmatpush1.msra.mxu0 %v211
    %286 = vmatprep.subr.mxu0 0.0
    %287 = vmatpush1.msra.mxu0 %v209
    %288 = vmatprep.subr.mxu0 0.0
    %289 = vmatpush1.msra.mxu0 %v207
    %290 = vmatprep.subr.mxu0 0.0
    %291 = vmatpush1.msra.mxu0 %v205
    %292 = vmatprep.subr.mxu0 0.0
    %293 = vmatpush1.msra.mxu0 %v203
    %294 = vmatprep.subr.mxu0 0.0
    %295 = vmatpush2.msra.mxu0 0.0
    %296 = vmatprep.subr.mxu0 0.0
    %297 = vmatpush2.msra.mxu0 0.0
    %298 = vmatprep.subr.mxu0 0.0
    %299 = vmatpush2.msra.mxu0 0.0
    %300 = vmatprep.subr.mxu0 0.0
    %301 = vmatpush2.msra.mxu0 0.0
    %302 = vmatprep.subr.mxu0 0.0
    %303 = vmatpush2.msra.mxu0 0.0
    %304 = vmatprep.subr.mxu0 0.0
    %305 = vmatpush2.msra.mxu0 0.0
    %306 = vmatprep.subr.mxu0 0.0
    %307 = vmatpush2.msra.mxu0 0.0
    %308 = vmatprep.subr.mxu0 0.0
    %309 = vmatpush2.msra.mxu0 0.0
    %310 = vmatprep.subr.mxu0 0.0
    %311 = vmatpush2.msra.mxu0 0.0
    %312 = vmatprep.subr.mxu0 0.0
    %313 = vmatpush2.msra.mxu0 0.0
    %314 = vmatprep.subr.mxu0 0.0
    %315 = vmatpush2.msra.mxu0 0.0
    %316 = vmatprep.subr.mxu0 0.0
    %317 = vmatpush2.msra.mxu0 0.0
    %318 = vmatprep.subr.mxu0 0.0
    %319 = vmatpush2.msra.mxu0 0.0
    %320 = vmatprep.subr.mxu0 0.0
    %321 = vmatpush2.msra.mxu0 0.0
    %322 = vmatprep.subr.mxu0 0.0
    %323 = vmatpush2.msra.mxu0 0.0
    %324 = vmatprep.subr.mxu0 0.0
    %325 = vmatpush2.msra.mxu0 0.0
    %326 = vmatprep.mubr.f32.mxu0 0.0
    %327 = vmatmul.mubr.f32.gmra.mxu0 %v224
    %v328 = vpop.f32.mrf.mxu0
    %v329 = vadd.f32 0.0, %v328
    %v330 = vpop.f32.mrf.mxu0
    %331 = vmatprep.mubr.f32.mxu0 0.0
    %332 = vmatmul.mubr.f32.gmra.mxu0 %v227
    %v333 = vpop.f32.mrf.mxu0
    %v334 = vadd.f32 0.0, %v333
    %v335 = vpop.f32.mrf.mxu0
    %336 = vmatprep.mubr.f32.mxu0 0.0
    %337 = vmatmul.mubr.f32.gmra.mxu0 %v230
    %v338 = vpop.f32.mrf.mxu0
    %v339 = vadd.f32 0.0, %v338
    %v340 = vpop.f32.mrf.mxu0
    %341 = vmatprep.mubr.f32.mxu0 0.0
    %342 = vmatmul.mubr.f32.gmra.mxu0 %v233
    %v343 = vpop.f32.mrf.mxu0
    %v344 = vadd.f32 0.0, %v343
    %v345 = vpop.f32.mrf.mxu0
    %346 = vmatprep.mubr.f32.mxu0 0.0
    %347 = vmatmul.mubr.f32.gmra.mxu0 %v236
    %v348 = vpop.f32.mrf.mxu0
    %v349 = vadd.f32 0.0, %v348
    %v350 = vpop.f32.mrf.mxu0
    %351 = vmatprep.mubr.f32.mxu0 0.0
    %352 = vmatmul.mubr.f32.gmra.mxu0 %v239
    %v353 = vpop.f32.mrf.mxu0
    %v354 = vadd.f32 0.0, %v353
    %v355 = vpop.f32.mrf.mxu0
    %356 = vmatprep.mubr.f32.mxu0 0.0
    %357 = vmatmul.mubr.f32.gmra.mxu0 %v242
    %v358 = vpop.f32.mrf.mxu0
    %v359 = vadd.f32 0.0, %v358
    %v360 = vpop.f32.mrf.mxu0
    %361 = vmatprep.mubr.f32.mxu0 0.0
    %362 = vmatmul.mubr.f32.gmra.mxu0 %v245
    %v363 = vpop.f32.mrf.mxu0
    %v364 = vadd.f32 0.0, %v363
    %v365 = vpop.f32.mrf.mxu0
    %366 = vmatprep.mubr.f32.mxu0 0.0
    %367 = vmatmul.mubr.f32.gmra.mxu0 %v248
    %v368 = vpop.f32.mrf.mxu0
    %v369 = vadd.f32 0.0, %v368
    %v370 = vpop.f32.mrf.mxu0
    %371 = vmatprep.mubr.f32.mxu0 0.0
    %372 = vmatmul.mubr.f32.gmra.mxu0 %v251
    %v373 = vpop.f32.mrf.mxu0
    %v374 = vadd.f32 0.0, %v373
    %v375 = vpop.f32.mrf.mxu0
    %376 = vmatprep.mubr.f32.mxu0 0.0
    %377 = vmatmul.mubr.f32.gmra.mxu0 %v254
    %v378 = vpop.f32.mrf.mxu0
    %v379 = vadd.f32 0.0, %v378
    %v380 = vpop.f32.mrf.mxu0
    %381 = vmatprep.mubr.f32.mxu0 0.0
    %382 = vmatmul.mubr.f32.gmra.mxu0 %v257
    %v383 = vpop.f32.mrf.mxu0
    %v384 = vadd.f32 0.0, %v383
    %v385 = vpop.f32.mrf.mxu0
    %386 = vdwg.mxu0
    %v388 = vsel %vm222, %v111, 0
    %v391 = vsel %vm222, %v112, 0
    %v394 = vsel %vm222, %v113, 0
    %v397 = vsel %vm222, %v114, 0
    %v400 = vsel %vm222, %v115, 0
    %v403 = vsel %vm222, %v116, 0
    %v406 = vsel %vm222, %v117, 0
    %v409 = vsel %vm222, %v118, 0
    %v412 = vsel %vm222, %v119, 0
    %v415 = vsel %vm222, %v120, 0
    %v418 = vsel %vm222, %v121, 0
    %v421 = vsel %vm222, %v122, 0
    %v423 = vsel %vm259, %v50, 0
    %425 = vmatprep.subr.mxu0 0.0
    %426 = vmatpush1.msra.mxu0 0.0
    %427 = vmatprep.subr.mxu0 0.0
    %428 = vmatpush1.msra.mxu0 0.0
    %429 = vmatprep.subr.mxu0 0.0
    %430 = vmatpush1.msra.mxu0 0.0
    %431 = vmatprep.subr.mxu0 0.0
    %432 = vmatpush1.msra.mxu0 0.0
    %433 = vmatprep.subr.mxu0 0.0
    %434 = vmatpush1.msra.mxu0 0.0
    %435 = vmatprep.subr.mxu0 0.0
    %436 = vmatpush1.msra.mxu0 0.0
    %437 = vmatprep.subr.mxu0 0.0
    %438 = vmatpush1.msra.mxu0 0.0
    %439 = vmatprep.subr.mxu0 0.0
    %440 = vmatpush1.msra.mxu0 0.0
    %441 = vmatprep.subr.mxu0 0.0
    %442 = vmatpush1.msra.mxu0 0.0
    %443 = vmatprep.subr.mxu0 0.0
    %444 = vmatpush1.msra.mxu0 %v423
    %445 = vmatprep.subr.mxu0 0.0
    %446 = vmatpush1.msra.mxu0 %v49
    %447 = vmatprep.subr.mxu0 0.0
    %448 = vmatpush1.msra.mxu0 %v48
    %449 = vmatprep.subr.mxu0 0.0
    %450 = vmatpush1.msra.mxu0 %v47
    %451 = vmatprep.subr.mxu0 0.0
    %452 = vmatpush1.msra.mxu0 %v46
    %453 = vmatprep.subr.mxu0 0.0
    %454 = vmatpush1.msra.mxu0 %v45
    %455 = vmatprep.subr.mxu0 0.0
    %456 = vmatpush1.msra.mxu0 %v44
    %457 = vmatprep.subr.mxu0 0.0
    %458 = vmatpush2.msra.mxu0 0.0
    %459 = vmatprep.subr.mxu0 0.0
    %460 = vmatpush2.msra.mxu0 0.0
    %461 = vmatprep.subr.mxu0 0.0
    %462 = vmatpush2.msra.mxu0 0.0
    %463 = vmatprep.subr.mxu0 0.0
    %464 = vmatpush2.msra.mxu0 0.0
    %465 = vmatprep.subr.mxu0 0.0
    %466 = vmatpush2.msra.mxu0 0.0
    %467 = vmatprep.subr.mxu0 0.0
    %468 = vmatpush2.msra.mxu0 0.0
    %469 = vmatprep.subr.mxu0 0.0
    %470 = vmatpush2.msra.mxu0 0.0
    %471 = vmatprep.subr.mxu0 0.0
    %472 = vmatpush2.msra.mxu0 0.0
    %473 = vmatprep.subr.mxu0 0.0
    %474 = vmatpush2.msra.mxu0 0.0
    %475 = vmatprep.subr.mxu0 0.0
    %476 = vmatpush2.msra.mxu0 0.0
    %477 = vmatprep.subr.mxu0 0.0
    %478 = vmatpush2.msra.mxu0 0.0
    %479 = vmatprep.subr.mxu0 0.0
    %480 = vmatpush2.msra.mxu0 0.0
    %481 = vmatprep.subr.mxu0 0.0
    %482 = vmatpush2.msra.mxu0 0.0
    %483 = vmatprep.subr.mxu0 0.0
    %484 = vmatpush2.msra.mxu0 0.0
    %485 = vmatprep.subr.mxu0 0.0
    %486 = vmatpush2.msra.mxu0 0.0
    %487 = vmatprep.subr.mxu0 0.0
    %488 = vmatpush2.msra.mxu0 0.0
    %489 = vmatprep.mubr.f32.mxu0 0.0
    %490 = vmatmul.mubr.f32.gmra.mxu0 %v388
    %v491 = vpop.f32.mrf.mxu0
    %v492 = vadd.f32 %v329, %v491
    %v493 = vpop.f32.mrf.mxu0
    %494 = vmatprep.mubr.f32.mxu0 0.0
    %495 = vmatmul.mubr.f32.gmra.mxu0 %v391
    %v496 = vpop.f32.mrf.mxu0
    %v497 = vadd.f32 %v334, %v496
    %v498 = vpop.f32.mrf.mxu0
    %499 = vmatprep.mubr.f32.mxu0 0.0
    %500 = vmatmul.mubr.f32.gmra.mxu0 %v394
    %v501 = vpop.f32.mrf.mxu0
    %v502 = vadd.f32 %v339, %v501
    %v503 = vpop.f32.mrf.mxu0
    %504 = vmatprep.mubr.f32.mxu0 0.0
    %505 = vmatmul.mubr.f32.gmra.mxu0 %v397
    %v506 = vpop.f32.mrf.mxu0
    %v507 = vadd.f32 %v344, %v506
    %v508 = vpop.f32.mrf.mxu0
    %509 = vmatprep.mubr.f32.mxu0 0.0
    %510 = vmatmul.mubr.f32.gmra.mxu0 %v400
    %v511 = vpop.f32.mrf.mxu0
    %v512 = vadd.f32 %v349, %v511
    %v513 = vpop.f32.mrf.mxu0
    %514 = vmatprep.mubr.f32.mxu0 0.0
    %515 = vmatmul.mubr.f32.gmra.mxu0 %v403
    %v516 = vpop.f32.mrf.mxu0
    %v517 = vadd.f32 %v354, %v516
    %v518 = vpop.f32.mrf.mxu0
    %519 = vmatprep.mubr.f32.mxu0 0.0
    %520 = vmatmul.mubr.f32.gmra.mxu0 %v406
    %v521 = vpop.f32.mrf.mxu0
    %v522 = vadd.f32 %v359, %v521
    %v523 = vpop.f32.mrf.mxu0
    %524 = vmatprep.mubr.f32.mxu0 0.0
    %525 = vmatmul.mubr.f32.gmra.mxu0 %v409
    %v526 = vpop.f32.mrf.mxu0
    %v527 = vadd.f32 %v364, %v526
    %v528 = vpop.f32.mrf.mxu0
    %529 = vmatprep.mubr.f32.mxu0 0.0
    %530 = vmatmul.mubr.f32.gmra.mxu0 %v412
    %v531 = vpop.f32.mrf.mxu0
    %v532 = vadd.f32 %v369, %v531
    %v533 = vpop.f32.mrf.mxu0
    %534 = vmatprep.mubr.f32.mxu0 0.0
    %535 = vmatmul.mubr.f32.gmra.mxu0 %v415
    %v536 = vpop.f32.mrf.mxu0
    %v537 = vadd.f32 %v374, %v536
    %v538 = vpop.f32.mrf.mxu0
    %539 = vmatprep.mubr.f32.mxu0 0.0
    %540 = vmatmul.mubr.f32.gmra.mxu0 %v418
    %v541 = vpop.f32.mrf.mxu0
    %v542 = vadd.f32 %v379, %v541
    %v543 = vpop.f32.mrf.mxu0
    %544 = vmatprep.mubr.f32.mxu0 0.0
    %545 = vmatmul.mubr.f32.gmra.mxu0 %v421
    %v546 = vpop.f32.mrf.mxu0
    %v547 = vadd.f32 %v384, %v546
    %v548 = vpop.f32.mrf.mxu0
    %549 = vdwg.mxu0
    %550 = vset.pattern.permute.xlu0 2
    %551 = vperm.xlu0 %550, %v30
    %v552 = vpop.permute.xlu0 %551
    %553 = vset.pattern.permute.xlu0 2
    %554 = vperm.xlu0 %553, %v31
    %v555 = vpop.permute.xlu0 %554
    %556 = vset.pattern.permute.xlu0 2
    %557 = vperm.xlu0 %556, %v32
    %v558 = vpop.permute.xlu0 %557
    %559 = vset.pattern.permute.xlu0 2
    %560 = vperm.xlu0 %559, %v33
    %v561 = vpop.permute.xlu0 %560
    %562 = vset.pattern.permute.xlu0 2
    %563 = vperm.xlu0 %562, %v34
    %v564 = vpop.permute.xlu0 %563
    %565 = vset.pattern.permute.xlu0 2
    %566 = vperm.xlu0 %565, %v35
    %v567 = vpop.permute.xlu0 %566
    %568 = vset.pattern.permute.xlu0 2
    %569 = vperm.xlu0 %568, %v36
    %v570 = vpop.permute.xlu0 %569
    %571 = vset.pattern.permute.xlu0 2
    %572 = vperm.xlu0 %571, %v37
    %v573 = vpop.permute.xlu0 %572
    %574 = vset.pattern.permute.xlu0 2
    %575 = vperm.xlu0 %574, %v38
    %v576 = vpop.permute.xlu0 %575
    %577 = vset.pattern.permute.xlu0 2
    %578 = vperm.xlu0 %577, %v39
    %v579 = vpop.permute.xlu0 %578
    %580 = vset.pattern.permute.xlu0 2
    %581 = vperm.xlu0 %580, %v40
    %v582 = vpop.permute.xlu0 %581
    %583 = vset.pattern.permute.xlu0 2
    %584 = vperm.xlu0 %583, %v41
    %v585 = vpop.permute.xlu0 %584
    %vm586 = vcmp.eq.s32.totalorder %v552, %v43
    %vm587 = vcmp.eq.s32.totalorder %v555, %v43
    %vm588 = vcmp.eq.s32.totalorder %v558, %v43
    %vm589 = vcmp.eq.s32.totalorder %v561, %v43
    %vm590 = vcmp.eq.s32.totalorder %v564, %v43
    %vm591 = vcmp.eq.s32.totalorder %v567, %v43
    %vm592 = vcmp.eq.s32.totalorder %v570, %v43
    %vm593 = vcmp.eq.s32.totalorder %v573, %v43
    %vm594 = vcmp.eq.s32.totalorder %v576, %v43
    %vm595 = vcmp.eq.s32.totalorder %v579, %v43
    %vm596 = vcmp.eq.s32.totalorder %v582, %v43
    %vm597 = vcmp.eq.s32.totalorder %v585, %v43
    %v598 = vsel %vm586, 1, 0
    %v599 = vsel %vm587, 1, 0
    %v600 = vsel %vm588, 1, 0
    %v601 = vsel %vm589, 1, 0
    %v602 = vsel %vm590, 1, 0
    %v603 = vsel %vm591, 1, 0
    %v604 = vsel %vm592, 1, 0
    %v605 = vsel %vm593, 1, 0
    %v606 = vsel %vm594, 1, 0
    %v607 = vsel %vm595, 1, 0
    %v608 = vsel %vm596, 1, 0
    %v609 = vsel %vm597, 1, 0
    %v610 = vcvt.s32.f32 %v598
    %v611 = vcvt.s32.f32 %v599
    %v612 = vcvt.s32.f32 %v600
    %v613 = vcvt.s32.f32 %v601
    %v614 = vcvt.s32.f32 %v602
    %v615 = vcvt.s32.f32 %v603
    %v616 = vcvt.s32.f32 %v604
    %v617 = vcvt.s32.f32 %v605
    %v618 = vcvt.s32.f32 %v606
    %v619 = vcvt.s32.f32 %v607
    %v620 = vcvt.s32.f32 %v608
    %v621 = vcvt.s32.f32 %v609
    %622 = vrot.lane.b32.xlu0 %v44, 96
    %v623 = vpop.permute.xlu0 %622
    %624 = vrot.lane.b32.xlu0 %v45, 96
    %v625 = vpop.permute.xlu0 %624
    %626 = vrot.lane.b32.xlu0 %v46, 96
    %v627 = vpop.permute.xlu0 %626
    %628 = vrot.lane.b32.xlu0 %v47, 96
    %v629 = vpop.permute.xlu0 %628
    %630 = vrot.lane.b32.xlu0 %v48, 96
    %v631 = vpop.permute.xlu0 %630
    %632 = vrot.lane.b32.xlu0 %v49, 96
    %v633 = vpop.permute.xlu0 %632
    %634 = vrot.lane.b32.xlu0 %v50, 96
    %v635 = vpop.permute.xlu0 %634
    %v643 = vsel %vm222, %v610, 0
    %v646 = vsel %vm222, %v611, 0
    %v649 = vsel %vm222, %v612, 0
    %v652 = vsel %vm222, %v613, 0
    %v655 = vsel %vm222, %v614, 0
    %v658 = vsel %vm222, %v615, 0
    %v661 = vsel %vm222, %v616, 0
    %v664 = vsel %vm222, %v617, 0
    %v667 = vsel %vm222, %v618, 0
    %v670 = vsel %vm222, %v619, 0
    %v673 = vsel %vm222, %v620, 0
    %v676 = vsel %vm222, %v621, 0
    %v678 = vsel %vm259, %v635, 0
    %680 = vmatprep.subr.mxu0 0.0
    %681 = vmatpush1.msra.mxu0 0.0
    %682 = vmatprep.subr.mxu0 0.0
    %683 = vmatpush1.msra.mxu0 0.0
    %684 = vmatprep.subr.mxu0 0.0
    %685 = vmatpush1.msra.mxu0 0.0
    %686 = vmatprep.subr.mxu0 0.0
    %687 = vmatpush1.msra.mxu0 0.0
    %688 = vmatprep.subr.mxu0 0.0
    %689 = vmatpush1.msra.mxu0 0.0
    %690 = vmatprep.subr.mxu0 0.0
    %691 = vmatpush1.msra.mxu0 0.0
    %692 = vmatprep.subr.mxu0 0.0
    %693 = vmatpush1.msra.mxu0 0.0
    %694 = vmatprep.subr.mxu0 0.0
    %695 = vmatpush1.msra.mxu0 0.0
    %696 = vmatprep.subr.mxu0 0.0
    %697 = vmatpush1.msra.mxu0 0.0
    %698 = vmatprep.subr.mxu0 0.0
    %699 = vmatpush1.msra.mxu0 %v678
    %700 = vmatprep.subr.mxu0 0.0
    %701 = vmatpush1.msra.mxu0 %v633
    %702 = vmatprep.subr.mxu0 0.0
    %703 = vmatpush1.msra.mxu0 %v631
    %704 = vmatprep.subr.mxu0 0.0
    %705 = vmatpush1.msra.mxu0 %v629
    %706 = vmatprep.subr.mxu0 0.0
    %707 = vmatpush1.msra.mxu0 %v627
    %708 = vmatprep.subr.mxu0 0.0
    %709 = vmatpush1.msra.mxu0 %v625
    %710 = vmatprep.subr.mxu0 0.0
    %711 = vmatpush1.msra.mxu0 %v623
    %712 = vmatprep.subr.mxu0 0.0
    %713 = vmatpush2.msra.mxu0 0.0
    %714 = vmatprep.subr.mxu0 0.0
    %715 = vmatpush2.msra.mxu0 0.0
    %716 = vmatprep.subr.mxu0 0.0
    %717 = vmatpush2.msra.mxu0 0.0
    %718 = vmatprep.subr.mxu0 0.0
    %719 = vmatpush2.msra.mxu0 0.0
    %720 = vmatprep.subr.mxu0 0.0
    %721 = vmatpush2.msra.mxu0 0.0
    %722 = vmatprep.subr.mxu0 0.0
    %723 = vmatpush2.msra.mxu0 0.0
    %724 = vmatprep.subr.mxu0 0.0
    %725 = vmatpush2.msra.mxu0 0.0
    %726 = vmatprep.subr.mxu0 0.0
    %727 = vmatpush2.msra.mxu0 0.0
    %728 = vmatprep.subr.mxu0 0.0
    %729 = vmatpush2.msra.mxu0 0.0
    %730 = vmatprep.subr.mxu0 0.0
    %731 = vmatpush2.msra.mxu0 0.0
    %732 = vmatprep.subr.mxu0 0.0
    %733 = vmatpush2.msra.mxu0 0.0
    %734 = vmatprep.subr.mxu0 0.0
    %735 = vmatpush2.msra.mxu0 0.0
    %736 = vmatprep.subr.mxu0 0.0
    %737 = vmatpush2.msra.mxu0 0.0
    %738 = vmatprep.subr.mxu0 0.0
    %739 = vmatpush2.msra.mxu0 0.0
    %740 = vmatprep.subr.mxu0 0.0
    %741 = vmatpush2.msra.mxu0 0.0
    %742 = vmatprep.subr.mxu0 0.0
    %743 = vmatpush2.msra.mxu0 0.0
    %744 = vmatprep.mubr.f32.mxu0 0.0
    %745 = vmatmul.mubr.f32.gmra.mxu0 %v643
    %v746 = vpop.f32.mrf.mxu0
    %v747 = vadd.f32 0.0, %v746
    %v748 = vpop.f32.mrf.mxu0
    %749 = vmatprep.mubr.f32.mxu0 0.0
    %750 = vmatmul.mubr.f32.gmra.mxu0 %v646
    %v751 = vpop.f32.mrf.mxu0
    %v752 = vadd.f32 0.0, %v751
    %v753 = vpop.f32.mrf.mxu0
    %754 = vmatprep.mubr.f32.mxu0 0.0
    %755 = vmatmul.mubr.f32.gmra.mxu0 %v649
    %v756 = vpop.f32.mrf.mxu0
    %v757 = vadd.f32 0.0, %v756
    %v758 = vpop.f32.mrf.mxu0
    %759 = vmatprep.mubr.f32.mxu0 0.0
    %760 = vmatmul.mubr.f32.gmra.mxu0 %v652
    %v761 = vpop.f32.mrf.mxu0
    %v762 = vadd.f32 0.0, %v761
    %v763 = vpop.f32.mrf.mxu0
    %764 = vmatprep.mubr.f32.mxu0 0.0
    %765 = vmatmul.mubr.f32.gmra.mxu0 %v655
    %v766 = vpop.f32.mrf.mxu0
    %v767 = vadd.f32 0.0, %v766
    %v768 = vpop.f32.mrf.mxu0
    %769 = vmatprep.mubr.f32.mxu0 0.0
    %770 = vmatmul.mubr.f32.gmra.mxu0 %v658
    %v771 = vpop.f32.mrf.mxu0
    %v772 = vadd.f32 0.0, %v771
    %v773 = vpop.f32.mrf.mxu0
    %774 = vmatprep.mubr.f32.mxu0 0.0
    %775 = vmatmul.mubr.f32.gmra.mxu0 %v661
    %v776 = vpop.f32.mrf.mxu0
    %v777 = vadd.f32 0.0, %v776
    %v778 = vpop.f32.mrf.mxu0
    %779 = vmatprep.mubr.f32.mxu0 0.0
    %780 = vmatmul.mubr.f32.gmra.mxu0 %v664
    %v781 = vpop.f32.mrf.mxu0
    %v782 = vadd.f32 0.0, %v781
    %v783 = vpop.f32.mrf.mxu0
    %784 = vmatprep.mubr.f32.mxu0 0.0
    %785 = vmatmul.mubr.f32.gmra.mxu0 %v667
    %v786 = vpop.f32.mrf.mxu0
    %v787 = vadd.f32 0.0, %v786
    %v788 = vpop.f32.mrf.mxu0
    %789 = vmatprep.mubr.f32.mxu0 0.0
    %790 = vmatmul.mubr.f32.gmra.mxu0 %v670
    %v791 = vpop.f32.mrf.mxu0
    %v792 = vadd.f32 0.0, %v791
    %v793 = vpop.f32.mrf.mxu0
    %794 = vmatprep.mubr.f32.mxu0 0.0
    %795 = vmatmul.mubr.f32.gmra.mxu0 %v673
    %v796 = vpop.f32.mrf.mxu0
    %v797 = vadd.f32 0.0, %v796
    %v798 = vpop.f32.mrf.mxu0
    %799 = vmatprep.mubr.f32.mxu0 0.0
    %800 = vmatmul.mubr.f32.gmra.mxu0 %v676
    %v801 = vpop.f32.mrf.mxu0
    %v802 = vadd.f32 0.0, %v801
    %v803 = vpop.f32.mrf.mxu0
    %804 = vdwg.mxu0
    %v805 = vadd.f32 %v492, %v747
    %v806 = vadd.f32 %v497, %v752
    %v807 = vadd.f32 %v502, %v757
    %v808 = vadd.f32 %v507, %v762
    %v809 = vadd.f32 %v512, %v767
    %v810 = vadd.f32 %v517, %v772
    %v811 = vadd.f32 %v522, %v777
    %v812 = vadd.f32 %v527, %v782
    %v813 = vadd.f32 %v532, %v787
    %v814 = vadd.f32 %v537, %v792
    %v815 = vadd.f32 %v542, %v797
    %v816 = vadd.f32 %v547, %v802
    %v817 = vld [vmem:[%s2] sm:$0x1]
    %v819 = vlaneseq
    %v820 = vshrl.u32 %v819, 7
    %v821 = vsub.s32 0, %v820
    %v822 = vrot.slane %v817, %v821
    %v824 = vadd.f32 %v805, %v822
    %v825 = vadd.f32 %v806, %v822
    %v826 = vadd.f32 %v807, %v822
    %v827 = vadd.f32 %v808, %v822
    %v828 = vadd.f32 %v809, %v822
    %v829 = vadd.f32 %v810, %v822
    %v830 = vadd.f32 %v811, %v822
    %v831 = vadd.f32 %v812, %v822
    %v832 = vadd.f32 %v813, %v822
    %v833 = vadd.f32 %v814, %v822
    %v834 = vadd.f32 %v815, %v822
    %v835 = vadd.f32 %v816, %v822
    %v836 = vmax.f32 %v824, 0.0
    %v837 = vmax.f32 %v825, 0.0
    %v838 = vmax.f32 %v826, 0.0
    %v839 = vmax.f32 %v827, 0.0
    %v840 = vmax.f32 %v828, 0.0
    %v841 = vmax.f32 %v829, 0.0
    %v842 = vmax.f32 %v830, 0.0
    %v843 = vmax.f32 %v831, 0.0
    %v844 = vmax.f32 %v832, 0.0
    %v845 = vmax.f32 %v833, 0.0
    %v846 = vmax.f32 %v834, 0.0
    %v847 = vmax.f32 %v835, 0.0
    %v848 = vlaneseq
    %v849 = vshrl.u32 %v848, 7
    %v850 = vadd.s32 %v849, 8
    %v851 = vadd.s32 %v849, 16
    %v852 = vadd.s32 %v849, 24
    %v853 = vadd.s32 %v849, 32
    %v854 = vadd.s32 %v849, 40
    %v855 = vadd.s32 %v849, 48
    %v856 = vadd.s32 %v849, 56
    %v857 = vadd.s32 %v849, 64
    %v858 = vadd.s32 %v849, 72
    %v859 = vadd.s32 %v849, 80
    %v860 = vadd.s32 %v849, 88
    %v861 = vand.u32 %v849, 15
    %v862 = vand.u32 %v850, 15
    %v863 = vand.u32 %v851, 15
    %v864 = vand.u32 %v852, 15
    %v865 = vand.u32 %v853, 15
    %v866 = vand.u32 %v854, 15
    %v867 = vand.u32 %v855, 15
    %v868 = vand.u32 %v856, 15
    %v869 = vand.u32 %v857, 15
    %v870 = vand.u32 %v858, 15
    %v871 = vand.u32 %v859, 15
    %v872 = vand.u32 %v860, 15
    %vm873 = vcmp.lt.s32.totalorder %v861, 10
    %vm874 = vcmp.lt.s32.totalorder %v862, 10
    %vm875 = vcmp.lt.s32.totalorder %v863, 10
    %vm876 = vcmp.lt.s32.totalorder %v864, 10
    %vm877 = vcmp.lt.s32.totalorder %v865, 10
    %vm878 = vcmp.lt.s32.totalorder %v866, 10
    %vm879 = vcmp.lt.s32.totalorder %v867, 10
    %vm880 = vcmp.lt.s32.totalorder %v868, 10
    %vm881 = vcmp.lt.s32.totalorder %v869, 10
    %vm882 = vcmp.lt.s32.totalorder %v870, 10
    %vm883 = vcmp.lt.s32.totalorder %v871, 10
    %vm884 = vcmp.lt.s32.totalorder %v872, 10
    %v885 = vsel %vm873, %v836, 0.0
    %v886 = vsel %vm874, %v837, 0.0
    %v887 = vsel %vm875, %v838, 0.0
    %v888 = vsel %vm876, %v839, 0.0
    %v889 = vsel %vm877, %v840, 0.0
    %v890 = vsel %vm878, %v841, 0.0
    %v891 = vsel %vm879, %v842, 0.0
    %v892 = vsel %vm880, %v843, 0.0
    %v893 = vsel %vm881, %v844, 0.0
    %v894 = vsel %vm882, %v845, 0.0
    %v895 = vsel %vm883, %v846, 0.0
    %v896 = vsel %vm884, %v847, 0.0
    %vm897 = vcmask 130048
    %v898 = vsel %vm897, %v885, -inf
    %v899 = vsel %vm897, %v886, -inf
    %v900 = vmax.f32 %v898, %v899
    %v901 = vrot.slane %v900, 4
    %v902 = vmax.f32 %v900, %v901
    %v903 = vrot.slane %v902, 2
    %v904 = vmax.f32 %v902, %v903
    %v905 = vrot.slane %v904, 1
    %v906 = vmax.f32 %v904, %v905
    %v907 = vsel %vm897, %v887, -inf
    %v908 = vsel %vm897, %v888, -inf
    %v909 = vmax.f32 %v907, %v908
    %v910 = vrot.slane %v909, 4
    %v911 = vmax.f32 %v909, %v910
    %v912 = vrot.slane %v911, 2
    %v913 = vmax.f32 %v911, %v912
    %v914 = vrot.slane %v913, 1
    %v915 = vmax.f32 %v913, %v914
    %v916 = vsel %vm897, %v889, -inf
    %v917 = vsel %vm897, %v890, -inf
    %v918 = vmax.f32 %v916, %v917
    %v919 = vrot.slane %v918, 4
    %v920 = vmax.f32 %v918, %v919
    %v921 = vrot.slane %v920, 2
    %v922 = vmax.f32 %v920, %v921
    %v923 = vrot.slane %v922, 1
    %v924 = vmax.f32 %v922, %v923
    %v925 = vsel %vm897, %v891, -inf
    %v926 = vsel %vm897, %v892, -inf
    %v927 = vmax.f32 %v925, %v926
    %v928 = vrot.slane %v927, 4
    %v929 = vmax.f32 %v927, %v928
    %v930 = vrot.slane %v929, 2
    %v931 = vmax.f32 %v929, %v930
    %v932 = vrot.slane %v931, 1
    %v933 = vmax.f32 %v931, %v932
    %v934 = vsel %vm897, %v893, -inf
    %v935 = vsel %vm897, %v894, -inf
    %v936 = vmax.f32 %v934, %v935
    %v937 = vrot.slane %v936, 4
    %v938 = vmax.f32 %v936, %v937
    %v939 = vrot.slane %v938, 2
    %v940 = vmax.f32 %v938, %v939
    %v941 = vrot.slane %v940, 1
    %v942 = vmax.f32 %v940, %v941
    %v943 = vsel %vm897, %v895, -inf
    %v944 = vsel %vm897, %v896, -inf
    %v945 = vmax.f32 %v943, %v944
    %v946 = vrot.slane %v945, 4
    %v947 = vmax.f32 %v945, %v946
    %v948 = vrot.slane %v947, 2
    %v949 = vmax.f32 %v947, %v948
    %v950 = vrot.slane %v949, 1
    %v951 = vmax.f32 %v949, %v950
    %v952 = vld [vmem:[%s3] sm:$0xff]
    %v953 = vld [vmem:[%s3 + $0x8] sm:$0xff]
    %v954 = vld [vmem:[%s3 + $0x10] sm:$0xff]
    %v955 = vld [vmem:[%s3 + $0x18] sm:$0xff]
    %v956 = vld [vmem:[%s5] sm:$0x3]
    %v958 = vlaneseq
    %v959 = vshrl.u32 %v958, 7
    %v960 = vsub.s32 0, %v959
    %v961 = vrot.slane %v956, %v960
    %v962 = vlaneseq
    %v963 = vshrl.u32 %v962, 7
    %v964 = vsub.s32 1, %v963
    %v965 = vrot.slane %v956, %v964
    %vm974 = vcmask 1041409
    %v975 = vsel %vm974, %v915, %v906
    %vm976 = vcmask 1042434
    %v977 = vsel %vm976, %v924, %v975
    %vm978 = vcmask 1043459
    %v979 = vsel %vm978, %v933, %v977
    %vm980 = vcmask 1044484
    %v981 = vsel %vm980, %v942, %v979
    %vm982 = vcmask 1045509
    %v983 = vsel %vm982, %v951, %v981
    %v984 = vsel %vm897, %v983, 0
    %986 = vmatprep.subr.mxu0 0.0
    %987 = vmatpush1.msra.mxu0 0.0
    %988 = vmatprep.subr.mxu0 0.0
    %989 = vmatpush1.msra.mxu0 0.0
    %990 = vmatprep.subr.mxu0 0.0
    %991 = vmatpush1.msra.mxu0 0.0
    %992 = vmatprep.subr.mxu0 0.0
    %993 = vmatpush1.msra.mxu0 0.0
    %994 = vmatprep.subr.mxu0 0.0
    %995 = vmatpush1.msra.mxu0 0.0
    %996 = vmatprep.subr.mxu0 0.0
    %997 = vmatpush1.msra.mxu0 0.0
    %998 = vmatprep.subr.mxu0 0.0
    %999 = vmatpush1.msra.mxu0 0.0
    %1000 = vmatprep.subr.mxu0 0.0
    %1001 = vmatpush1.msra.mxu0 0.0
    %1002 = vmatprep.subr.mxu0 0.0
    %1003 = vmatpush1.msra.mxu0 0.0
    %1004 = vmatprep.subr.mxu0 0.0
    %1005 = vmatpush1.msra.mxu0 0.0
    %1006 = vmatprep.subr.mxu0 0.0
    %1007 = vmatpush1.msra.mxu0 0.0
    %1008 = vmatprep.subr.mxu0 0.0
    %1009 = vmatpush1.msra.mxu0 0.0
    %1010 = vmatprep.subr.mxu0 0.0
    %1011 = vmatpush1.msra.mxu0 0.0
    %1012 = vmatprep.subr.mxu0 0.0
    %1013 = vmatpush1.msra.mxu0 0.0
    %1014 = vmatprep.subr.mxu0 %v955
    %1015 = vmatpush1.msra.mxu0 %v954
    %1016 = vmatprep.subr.mxu0 %v953
    %1017 = vmatpush1.msra.mxu0 %v952
    %1018 = vmatprep.subr.mxu0 0.0
    %1019 = vmatpush2.msra.mxu0 0.0
    %1020 = vmatprep.subr.mxu0 0.0
    %1021 = vmatpush2.msra.mxu0 0.0
    %1022 = vmatprep.subr.mxu0 0.0
    %1023 = vmatpush2.msra.mxu0 0.0
    %1024 = vmatprep.subr.mxu0 0.0
    %1025 = vmatpush2.msra.mxu0 0.0
    %1026 = vmatprep.subr.mxu0 0.0
    %1027 = vmatpush2.msra.mxu0 0.0
    %1028 = vmatprep.subr.mxu0 0.0
    %1029 = vmatpush2.msra.mxu0 0.0
    %1030 = vmatprep.subr.mxu0 0.0
    %1031 = vmatpush2.msra.mxu0 0.0
    %1032 = vmatprep.subr.mxu0 0.0
    %1033 = vmatpush2.msra.mxu0 0.0
    %1034 = vmatprep.subr.mxu0 0.0
    %1035 = vmatpush2.msra.mxu0 0.0
    %1036 = vmatprep.subr.mxu0 0.0
    %1037 = vmatpush2.msra.mxu0 0.0
    %1038 = vmatprep.subr.mxu0 0.0
    %1039 = vmatpush2.msra.mxu0 0.0
    %1040 = vmatprep.subr.mxu0 0.0
    %1041 = vmatpush2.msra.mxu0 0.0
    %1042 = vmatprep.subr.mxu0 0.0
    %1043 = vmatpush2.msra.mxu0 0.0
    %1044 = vmatprep.subr.mxu0 0.0
    %1045 = vmatpush2.msra.mxu0 0.0
    %1046 = vmatprep.subr.mxu0 0.0
    %1047 = vmatpush2.msra.mxu0 0.0
    %1048 = vmatprep.subr.mxu0 0.0
    %1049 = vmatpush2.msra.mxu0 0.0
    %1050 = vmatprep.mubr.f32.mxu0 0.0
    %1051 = vmatmul.mubr.f32.gmra.mxu0 %v984
    %v1052 = vpop.f32.mrf.mxu0
    %v1053 = vadd.f32 %v961, %v1052
    %v1054 = vpop.f32.mrf.mxu0
    %v1055 = vadd.f32 %v965, %v1054
    %1056 = vdwg.mxu0
    %v1057 = vadd.s32 %v43, 128
    %v1058 = vand.u32 %v43, 32
    %v1059 = vand.u32 %v1057, 32
    %vm1060 = vcmp.eq.s32.totalorder %v1058, 0
    %vm1061 = vcmp.eq.s32.totalorder %v1059, 0
    %v1062 = vsel %vm1060, %v1053, 0.0
    %v1063 = vsel %vm1061, %v1055, 0.0
    %v1064 = vsub.f32 %v1053, %v1062
    %v1065 = vsub.f32 %v1055, %v1063
    %v1066 = vld [vmem:[%s4] sm:$0xff]
    %v1067 = vld [vmem:[%s4 + $0x8] sm:$0xff]
    %v1068 = vld [vmem:[%s4 + $0x10] sm:$0xff]
    %v1069 = vld [vmem:[%s4 + $0x18] sm:$0xff]
    %v1070 = vld [vmem:[%s4 + $0x20] sm:$0xff]
    %v1071 = vld [vmem:[%s4 + $0x28] sm:$0xff]
    %v1072 = vld [vmem:[%s4 + $0x30] sm:$0xff]
    %v1073 = vld [vmem:[%s4 + $0x38] sm:$0xff]
    %v1074 = vld [vmem:[%s4 + $0x40] sm:$0xff]
    %v1075 = vld [vmem:[%s4 + $0x48] sm:$0xff]
    %v1076 = vld [vmem:[%s4 + $0x50] sm:$0xff]
    %v1077 = vld [vmem:[%s4 + $0x58] sm:$0xff]
    %v1078 = vld [vmem:[%s4 + $0x60] sm:$0xff]
    %v1079 = vld [vmem:[%s4 + $0x68] sm:$0xff]
    %v1080 = vld [vmem:[%s4 + $0x70] sm:$0xff]
    %v1081 = vld [vmem:[%s4 + $0x78] sm:$0xff]
    %v1084 = vrot.slane %v1064, 5
    %v1085 = vrot.slane %v1065, 5
    %v1088 = vadd.f32 %v1062, %v1084
    %v1089 = vadd.f32 %v1063, %v1085
    %vm1090 = vcmask 523264
    %v1092 = vsel %vm1090, 0.0, 0
    %1094 = vmatprep.subr.mxu0 0.0
    %1095 = vmatpush1.msra.mxu0 0.0
    %1096 = vmatprep.subr.mxu0 0.0
    %1097 = vmatpush1.msra.mxu0 0.0
    %1098 = vmatprep.subr.mxu0 0.0
    %1099 = vmatpush1.msra.mxu0 0.0
    %1100 = vmatprep.subr.mxu0 0.0
    %1101 = vmatpush1.msra.mxu0 0.0
    %1102 = vmatprep.subr.mxu0 0.0
    %1103 = vmatpush1.msra.mxu0 0.0
    %1104 = vmatprep.subr.mxu0 0.0
    %1105 = vmatpush1.msra.mxu0 0.0
    %1106 = vmatprep.subr.mxu0 0.0
    %1107 = vmatpush1.msra.mxu0 0.0
    %1108 = vmatprep.subr.mxu0 0.0
    %1109 = vmatpush1.msra.mxu0 0.0
    %1110 = vmatprep.subr.mxu0 %v1081
    %1111 = vmatpush1.msra.mxu0 %v1080
    %1112 = vmatprep.subr.mxu0 %v1079
    %1113 = vmatpush1.msra.mxu0 %v1078
    %1114 = vmatprep.subr.mxu0 %v1077
    %1115 = vmatpush1.msra.mxu0 %v1076
    %1116 = vmatprep.subr.mxu0 %v1075
    %1117 = vmatpush1.msra.mxu0 %v1074
    %1118 = vmatprep.subr.mxu0 %v1073
    %1119 = vmatpush1.msra.mxu0 %v1072
    %1120 = vmatprep.subr.mxu0 %v1071
    %1121 = vmatpush1.msra.mxu0 %v1070
    %1122 = vmatprep.subr.mxu0 %v1069
    %1123 = vmatpush1.msra.mxu0 %v1068
    %1124 = vmatprep.subr.mxu0 %v1067
    %1125 = vmatpush1.msra.mxu0 %v1066
    %1126 = vmatprep.subr.mxu0 0.0
    %1127 = vmatpush2.msra.mxu0 0.0
    %1128 = vmatprep.subr.mxu0 0.0
    %1129 = vmatpush2.msra.mxu0 0.0
    %1130 = vmatprep.subr.mxu0 0.0
    %1131 = vmatpush2.msra.mxu0 0.0
    %1132 = vmatprep.subr.mxu0 0.0
    %1133 = vmatpush2.msra.mxu0 0.0
    %1134 = vmatprep.subr.mxu0 0.0
    %1135 = vmatpush2.msra.mxu0 0.0
    %1136 = vmatprep.subr.mxu0 0.0
    %1137 = vmatpush2.msra.mxu0 0.0
    %1138 = vmatprep.subr.mxu0 0.0
    %1139 = vmatpush2.msra.mxu0 0.0
    %1140 = vmatprep.subr.mxu0 0.0
    %1141 = vmatpush2.msra.mxu0 0.0
    %1142 = vmatprep.subr.mxu0 0.0
    %1143 = vmatpush2.msra.mxu0 0.0
    %1144 = vmatprep.subr.mxu0 0.0
    %1145 = vmatpush2.msra.mxu0 0.0
    %1146 = vmatprep.subr.mxu0 0.0
    %1147 = vmatpush2.msra.mxu0 0.0
    %1148 = vmatprep.subr.mxu0 0.0
    %1149 = vmatpush2.msra.mxu0 0.0
    %1150 = vmatprep.subr.mxu0 0.0
    %1151 = vmatpush2.msra.mxu0 0.0
    %1152 = vmatprep.subr.mxu0 0.0
    %1153 = vmatpush2.msra.mxu0 0.0
    %1154 = vmatprep.subr.mxu0 0.0
    %1155 = vmatpush2.msra.mxu0 0.0
    %1156 = vmatprep.subr.mxu0 0.0
    %1157 = vmatpush2.msra.mxu0 0.0
    %1158 = vmatprep.mubr.f32.mxu0 0.0
    %1159 = vmatmul.mubr.f32.gmra.mxu0 %v1092
    %v1160 = vpop.f32.mrf.mxu0
    %v1161 = vadd.f32 %v1088, %v1160
    %v1162 = vpop.f32.mrf.mxu0
    %v1163 = vadd.f32 %v1089, %v1162
    %1164 = vdwg.mxu0
    %v1165 = vxor.u32 %v1161, 2147483648
    %v1166 = vxor.u32 %v1163, 2147483648
    %v1167 = vmul.f32 %v1165, 1.442695
    %v1168 = vpow.pop %v1167
    %v1169 = vmul.f32 %v1166, 1.442695
    %v1170 = vpow.pop %v1169
    %v1171 = vadd.f32 %v1168, 1.0
    %v1172 = vadd.f32 %v1170, 1.0
    %v1173 = vrcp.pop %v1171
    %v1174 = vmul.f32 1.0, %v1173
    %v1175 = vrcp.pop %v1172
    %v1176 = vmul.f32 1.0, %v1175
    %v1177 = vtanh.pop %v1163
    %v1178 = vmul.f32 %v1174, 0.0
    %v1179 = vmul.f32 %v1174, %v1177
    %1181 = vrot.lane.b32.xlu0 %v1179, 64
    %v1182 = vpop.permute.xlu0 %1181
    %v1184 = vadd.f32 %v1178, %v1182
    %v1185 = vtanh.pop %v1184
    %v1186 = vmul.f32 %v1176, %v1185
    %v1187 = vadd.f32 %v1186, 0.0
    %v1188 = vrot.slane %v1064, 3
    %v1189 = vrot.slane %v1065, 3
    %v1192 = vadd.f32 %v1062, %v1188
    %v1193 = vadd.f32 %v1063, %v1189
    %1195 = vrot.lane.b32.xlu0 %v1186, 64
    %v1196 = vpop.permute.xlu0 %1195
    %v1199 = vrot.slane %v1192, 1
    %v1200 = vrot.slane %v1193, 1
    %v1203 = vsel %vm1090, %v1196, 0
    %1205 = vmatprep.subr.mxu0 0.0
    %1206 = vmatpush1.msra.mxu0 0.0
    %1207 = vmatprep.subr.mxu0 0.0
    %1208 = vmatpush1.msra.mxu0 0.0
    %1209 = vmatprep.subr.mxu0 0.0
    %1210 = vmatpush1.msra.mxu0 0.0
    %1211 = vmatprep.subr.mxu0 0.0
    %1212 = vmatpush1.msra.mxu0 0.0
    %1213 = vmatprep.subr.mxu0 0.0
    %1214 = vmatpush1.msra.mxu0 0.0
    %1215 = vmatprep.subr.mxu0 0.0
    %1216 = vmatpush1.msra.mxu0 0.0
    %1217 = vmatprep.subr.mxu0 0.0
    %1218 = vmatpush1.msra.mxu0 0.0
    %1219 = vmatprep.subr.mxu0 0.0
    %1220 = vmatpush1.msra.mxu0 0.0
    %1221 = vmatprep.subr.mxu0 %v1081
    %1222 = vmatpush1.msra.mxu0 %v1080
    %1223 = vmatprep.subr.mxu0 %v1079
    %1224 = vmatpush1.msra.mxu0 %v1078
    %1225 = vmatprep.subr.mxu0 %v1077
    %1226 = vmatpush1.msra.mxu0 %v1076
    %1227 = vmatprep.subr.mxu0 %v1075
    %1228 = vmatpush1.msra.mxu0 %v1074
    %1229 = vmatprep.subr.mxu0 %v1073
    %1230 = vmatpush1.msra.mxu0 %v1072
    %1231 = vmatprep.subr.mxu0 %v1071
    %1232 = vmatpush1.msra.mxu0 %v1070
    %1233 = vmatprep.subr.mxu0 %v1069
    %1234 = vmatpush1.msra.mxu0 %v1068
    %1235 = vmatprep.subr.mxu0 %v1067
    %1236 = vmatpush1.msra.mxu0 %v1066
    %1237 = vmatprep.subr.mxu0 0.0
    %1238 = vmatpush2.msra.mxu0 0.0
    %1239 = vmatprep.subr.mxu0 0.0
    %1240 = vmatpush2.msra.mxu0 0.0
    %1241 = vmatprep.subr.mxu0 0.0
    %1242 = vmatpush2.msra.mxu0 0.0
    %1243 = vmatprep.subr.mxu0 0.0
    %1244 = vmatpush2.msra.mxu0 0.0
    %1245 = vmatprep.subr.mxu0 0.0
    %1246 = vmatpush2.msra.mxu0 0.0
    %1247 = vmatprep.subr.mxu0 0.0
    %1248 = vmatpush2.msra.mxu0 0.0
    %1249 = vmatprep.subr.mxu0 0.0
    %1250 = vmatpush2.msra.mxu0 0.0
    %1251 = vmatprep.subr.mxu0 0.0
    %1252 = vmatpush2.msra.mxu0 0.0
    %1253 = vmatprep.subr.mxu0 0.0
    %1254 = vmatpush2.msra.mxu0 0.0
    %1255 = vmatprep.subr.mxu0 0.0
    %1256 = vmatpush2.msra.mxu0 0.0
    %1257 = vmatprep.subr.mxu0 0.0
    %1258 = vmatpush2.msra.mxu0 0.0
    %1259 = vmatprep.subr.mxu0 0.0
    %1260 = vmatpush2.msra.mxu0 0.0
    %1261 = vmatprep.subr.mxu0 0.0
    %1262 = vmatpush2.msra.mxu0 0.0
    %1263 = vmatprep.subr.mxu0 0.0
    %1264 = vmatpush2.msra.mxu0 0.0
    %1265 = vmatprep.subr.mxu0 0.0
    %1266 = vmatpush2.msra.mxu0 0.0
    %1267 = vmatprep.subr.mxu0 0.0
    %1268 = vmatpush2.msra.mxu0 0.0
    %1269 = vmatprep.mubr.f32.mxu0 0.0
    %1270 = vmatmul.mubr.f32.gmra.mxu0 %v1203
    %v1271 = vpop.f32.mrf.mxu0
    %v1272 = vadd.f32 %v1199, %v1271
    %v1273 = vpop.f32.mrf.mxu0
    %v1274 = vadd.f32 %v1200, %v1273
    %1275 = vdwg.mxu0
    %v1276 = vxor.u32 %v1272, 2147483648
    %v1277 = vxor.u32 %v1274, 2147483648
    %v1278 = vmul.f32 %v1276, 1.442695
    %v1279 = vpow.pop %v1278
    %v1280 = vmul.f32 %v1277, 1.442695
    %v1281 = vpow.pop %v1280
    %v1282 = vadd.f32 %v1279, 1.0
    %v1283 = vadd.f32 %v1281, 1.0
    %v1284 = vrcp.pop %v1282
    %v1285 = vmul.f32 1.0, %v1284
    %v1286 = vrcp.pop %v1283
    %v1287 = vmul.f32 1.0, %v1286
    %v1288 = vtanh.pop %v1274
    %v1289 = vmul.f32 %v1285, %v1184
    %v1290 = vmul.f32 %v1285, %v1288
    %1292 = vrot.lane.b32.xlu0 %v1290, 64
    %v1293 = vpop.permute.xlu0 %1292
    %v1295 = vadd.f32 %v1289, %v1293
    %v1296 = vtanh.pop %v1295
    %v1297 = vmul.f32 %v1287, %v1296
    %v1298 = vadd.f32 %v1187, %v1297
    %v1299 = vrot.slane %v1064, 1
    %v1300 = vrot.slane %v1065, 1
    %v1303 = vadd.f32 %v1062, %v1299
    %v1304 = vadd.f32 %v1063, %v1300
    %1306 = vrot.lane.b32.xlu0 %v1297, 64
    %v1307 = vpop.permute.xlu0 %1306
    %v1310 = vrot.slane %v1303, 2
    %v1311 = vrot.slane %v1304, 2
    %v1314 = vsel %vm1090, %v1307, 0
    %1316 = vmatprep.subr.mxu0 0.0
    %1317 = vmatpush1.msra.mxu0 0.0
    %1318 = vmatprep.subr.mxu0 0.0
    %1319 = vmatpush1.msra.mxu0 0.0
    %1320 = vmatprep.subr.mxu0 0.0
    %1321 = vmatpush1.msra.mxu0 0.0
    %1322 = vmatprep.subr.mxu0 0.0
    %1323 = vmatpush1.msra.mxu0 0.0
    %1324 = vmatprep.subr.mxu0 0.0
    %1325 = vmatpush1.msra.mxu0 0.0
    %1326 = vmatprep.subr.mxu0 0.0
    %1327 = vmatpush1.msra.mxu0 0.0
    %1328 = vmatprep.subr.mxu0 0.0
    %1329 = vmatpush1.msra.mxu0 0.0
    %1330 = vmatprep.subr.mxu0 0.0
    %1331 = vmatpush1.msra.mxu0 0.0
    %1332 = vmatprep.subr.mxu0 %v1081
    %1333 = vmatpush1.msra.mxu0 %v1080
    %1334 = vmatprep.subr.mxu0 %v1079
    %1335 = vmatpush1.msra.mxu0 %v1078
    %1336 = vmatprep.subr.mxu0 %v1077
    %1337 = vmatpush1.msra.mxu0 %v1076
    %1338 = vmatprep.subr.mxu0 %v1075
    %1339 = vmatpush1.msra.mxu0 %v1074
    %1340 = vmatprep.subr.mxu0 %v1073
    %1341 = vmatpush1.msra.mxu0 %v1072
    %1342 = vmatprep.subr.mxu0 %v1071
    %1343 = vmatpush1.msra.mxu0 %v1070
    %1344 = vmatprep.subr.mxu0 %v1069
    %1345 = vmatpush1.msra.mxu0 %v1068
    %1346 = vmatprep.subr.mxu0 %v1067
    %1347 = vmatpush1.msra.mxu0 %v1066
    %1348 = vmatprep.subr.mxu0 0.0
    %1349 = vmatpush2.msra.mxu0 0.0
    %1350 = vmatprep.subr.mxu0 0.0
    %1351 = vmatpush2.msra.mxu0 0.0
    %1352 = vmatprep.subr.mxu0 0.0
    %1353 = vmatpush2.msra.mxu0 0.0
    %1354 = vmatprep.subr.mxu0 0.0
    %1355 = vmatpush2.msra.mxu0 0.0
    %1356 = vmatprep.subr.mxu0 0.0
    %1357 = vmatpush2.msra.mxu0 0.0
    %1358 = vmatprep.subr.mxu0 0.0
    %1359 = vmatpush2.msra.mxu0 0.0
    %1360 = vmatprep.subr.mxu0 0.0
    %1361 = vmatpush2.msra.mxu0 0.0
    %1362 = vmatprep.subr.mxu0 0.0
    %1363 = vmatpush2.msra.mxu0 0.0
    %1364 = vmatprep.subr.mxu0 0.0
    %1365 = vmatpush2.msra.mxu0 0.0
    %1366 = vmatprep.subr.mxu0 0.0
    %1367 = vmatpush2.msra.mxu0 0.0
    %1368 = vmatprep.subr.mxu0 0.0
    %1369 = vmatpush2.msra.mxu0 0.0
    %1370 = vmatprep.subr.mxu0 0.0
    %1371 = vmatpush2.msra.mxu0 0.0
    %1372 = vmatprep.subr.mxu0 0.0
    %1373 = vmatpush2.msra.mxu0 0.0
    %1374 = vmatprep.subr.mxu0 0.0
    %1375 = vmatpush2.msra.mxu0 0.0
    %1376 = vmatprep.subr.mxu0 0.0
    %1377 = vmatpush2.msra.mxu0 0.0
    %1378 = vmatprep.subr.mxu0 0.0
    %1379 = vmatpush2.msra.mxu0 0.0
    %1380 = vmatprep.mubr.f32.mxu0 0.0
    %1381 = vmatmul.mubr.f32.gmra.mxu0 %v1314
    %v1382 = vpop.f32.mrf.mxu0
    %v1383 = vadd.f32 %v1310, %v1382
    %v1384 = vpop.f32.mrf.mxu0
    %v1385 = vadd.f32 %v1311, %v1384
    %1386 = vdwg.mxu0
    %v1387 = vxor.u32 %v1383, 2147483648
    %v1388 = vxor.u32 %v1385, 2147483648
    %v1389 = vmul.f32 %v1387, 1.442695
    %v1390 = vpow.pop %v1389
    %v1391 = vmul.f32 %v1388, 1.442695
    %v1392 = vpow.pop %v1391
    %v1393 = vadd.f32 %v1390, 1.0
    %v1394 = vadd.f32 %v1392, 1.0
    %v1395 = vrcp.pop %v1393
    %v1396 = vmul.f32 1.0, %v1395
    %v1397 = vrcp.pop %v1394
    %v1398 = vmul.f32 1.0, %v1397
    %v1399 = vtanh.pop %v1385
    %v1400 = vmul.f32 %v1396, %v1295
    %v1401 = vmul.f32 %v1396, %v1399
    %1403 = vrot.lane.b32.xlu0 %v1401, 64
    %v1404 = vpop.permute.xlu0 %1403
    %v1406 = vadd.f32 %v1400, %v1404
    %v1407 = vtanh.pop %v1406
    %v1408 = vmul.f32 %v1398, %v1407
    %v1409 = vadd.f32 %v1298, %v1408
    %v1410 = vrot.slane %v1064, 7
    %v1411 = vrot.slane %v1065, 7
    %v1414 = vadd.f32 %v1062, %v1410
    %v1415 = vadd.f32 %v1063, %v1411
    %1417 = vrot.lane.b32.xlu0 %v1408, 64
    %v1418 = vpop.permute.xlu0 %1417
    %v1421 = vrot.slane %v1414, 3
    %v1422 = vrot.slane %v1415, 3
    %v1425 = vsel %vm1090, %v1418, 0
    %1427 = vmatprep.subr.mxu0 0.0
    %1428 = vmatpush1.msra.mxu0 0.0
    %1429 = vmatprep.subr.mxu0 0.0
    %1430 = vmatpush1.msra.mxu0 0.0
    %1431 = vmatprep.subr.mxu0 0.0
    %1432 = vmatpush1.msra.mxu0 0.0
    %1433 = vmatprep.subr.mxu0 0.0
    %1434 = vmatpush1.msra.mxu0 0.0
    %1435 = vmatprep.subr.mxu0 0.0
    %1436 = vmatpush1.msra.mxu0 0.0
    %1437 = vmatprep.subr.mxu0 0.0
    %1438 = vmatpush1.msra.mxu0 0.0
    %1439 = vmatprep.subr.mxu0 0.0
    %1440 = vmatpush1.msra.mxu0 0.0
    %1441 = vmatprep.subr.mxu0 0.0
    %1442 = vmatpush1.msra.mxu0 0.0
    %1443 = vmatprep.subr.mxu0 %v1081
    %1444 = vmatpush1.msra.mxu0 %v1080
    %1445 = vmatprep.subr.mxu0 %v1079
    %1446 = vmatpush1.msra.mxu0 %v1078
    %1447 = vmatprep.subr.mxu0 %v1077
    %1448 = vmatpush1.msra.mxu0 %v1076
    %1449 = vmatprep.subr.mxu0 %v1075
    %1450 = vmatpush1.msra.mxu0 %v1074
    %1451 = vmatprep.subr.mxu0 %v1073
    %1452 = vmatpush1.msra.mxu0 %v1072
    %1453 = vmatprep.subr.mxu0 %v1071
    %1454 = vmatpush1.msra.mxu0 %v1070
    %1455 = vmatprep.subr.mxu0 %v1069
    %1456 = vmatpush1.msra.mxu0 %v1068
    %1457 = vmatprep.subr.mxu0 %v1067
    %1458 = vmatpush1.msra.mxu0 %v1066
    %1459 = vmatprep.subr.mxu0 0.0
    %1460 = vmatpush2.msra.mxu0 0.0
    %1461 = vmatprep.subr.mxu0 0.0
    %1462 = vmatpush2.msra.mxu0 0.0
    %1463 = vmatprep.subr.mxu0 0.0
    %1464 = vmatpush2.msra.mxu0 0.0
    %1465 = vmatprep.subr.mxu0 0.0
    %1466 = vmatpush2.msra.mxu0 0.0
    %1467 = vmatprep.subr.mxu0 0.0
    %1468 = vmatpush2.msra.mxu0 0.0
    %1469 = vmatprep.subr.mxu0 0.0
    %1470 = vmatpush2.msra.mxu0 0.0
    %1471 = vmatprep.subr.mxu0 0.0
    %1472 = vmatpush2.msra.mxu0 0.0
    %1473 = vmatprep.subr.mxu0 0.0
    %1474 = vmatpush2.msra.mxu0 0.0
    %1475 = vmatprep.subr.mxu0 0.0
    %1476 = vmatpush2.msra.mxu0 0.0
    %1477 = vmatprep.subr.mxu0 0.0
    %1478 = vmatpush2.msra.mxu0 0.0
    %1479 = vmatprep.subr.mxu0 0.0
    %1480 = vmatpush2.msra.mxu0 0.0
    %1481 = vmatprep.subr.mxu0 0.0
    %1482 = vmatpush2.msra.mxu0 0.0
    %1483 = vmatprep.subr.mxu0 0.0
    %1484 = vmatpush2.msra.mxu0 0.0
    %1485 = vmatprep.subr.mxu0 0.0
    %1486 = vmatpush2.msra.mxu0 0.0
    %1487 = vmatprep.subr.mxu0 0.0
    %1488 = vmatpush2.msra.mxu0 0.0
    %1489 = vmatprep.subr.mxu0 0.0
    %1490 = vmatpush2.msra.mxu0 0.0
    %1491 = vmatprep.mubr.f32.mxu0 0.0
    %1492 = vmatmul.mubr.f32.gmra.mxu0 %v1425
    %v1493 = vpop.f32.mrf.mxu0
    %v1494 = vadd.f32 %v1421, %v1493
    %v1495 = vpop.f32.mrf.mxu0
    %v1496 = vadd.f32 %v1422, %v1495
    %1497 = vdwg.mxu0
    %v1498 = vxor.u32 %v1494, 2147483648
    %v1499 = vxor.u32 %v1496, 2147483648
    %v1500 = vmul.f32 %v1498, 1.442695
    %v1501 = vpow.pop %v1500
    %v1502 = vmul.f32 %v1499, 1.442695
    %v1503 = vpow.pop %v1502
    %v1504 = vadd.f32 %v1501, 1.0
    %v1505 = vadd.f32 %v1503, 1.0
    %v1506 = vrcp.pop %v1504
    %v1507 = vmul.f32 1.0, %v1506
    %v1508 = vrcp.pop %v1505
    %v1509 = vmul.f32 1.0, %v1508
    %v1510 = vtanh.pop %v1496
    %v1511 = vmul.f32 %v1507, %v1406
    %v1512 = vmul.f32 %v1507, %v1510
    %1514 = vrot.lane.b32.xlu0 %v1512, 64
    %v1515 = vpop.permute.xlu0 %1514
    %v1517 = vadd.f32 %v1511, %v1515
    %v1518 = vtanh.pop %v1517
    %v1519 = vmul.f32 %v1509, %v1518
    %v1520 = vadd.f32 %v1409, %v1519
    %1522 = vrot.lane.b32.xlu0 %v1519, 64
    %v1523 = vpop.permute.xlu0 %1522
    %v1526 = vrot.slane %v1088, 4
    %v1527 = vrot.slane %v1089, 4
    %v1530 = vsel %vm1090, %v1523, 0
    %1532 = vmatprep.subr.mxu0 0.0
    %1533 = vmatpush1.msra.mxu0 0.0
    %1534 = vmatprep.subr.mxu0 0.0
    %1535 = vmatpush1.msra.mxu0 0.0
    %1536 = vmatprep.subr.mxu0 0.0
    %1537 = vmatpush1.msra.mxu0 0.0
    %1538 = vmatprep.subr.mxu0 0.0
    %1539 = vmatpush1.msra.mxu0 0.0
    %1540 = vmatprep.subr.mxu0 0.0
    %1541 = vmatpush1.msra.mxu0 0.0
    %1542 = vmatprep.subr.mxu0 0.0
    %1543 = vmatpush1.msra.mxu0 0.0
    %1544 = vmatprep.subr.mxu0 0.0
    %1545 = vmatpush1.msra.mxu0 0.0
    %1546 = vmatprep.subr.mxu0 0.0
    %1547 = vmatpush1.msra.mxu0 0.0
    %1548 = vmatprep.subr.mxu0 %v1081
    %1549 = vmatpush1.msra.mxu0 %v1080
    %1550 = vmatprep.subr.mxu0 %v1079
    %1551 = vmatpush1.msra.mxu0 %v1078
    %1552 = vmatprep.subr.mxu0 %v1077
    %1553 = vmatpush1.msra.mxu0 %v1076
    %1554 = vmatprep.subr.mxu0 %v1075
    %1555 = vmatpush1.msra.mxu0 %v1074
    %1556 = vmatprep.subr.mxu0 %v1073
    %1557 = vmatpush1.msra.mxu0 %v1072
    %1558 = vmatprep.subr.mxu0 %v1071
    %1559 = vmatpush1.msra.mxu0 %v1070
    %1560 = vmatprep.subr.mxu0 %v1069
    %1561 = vmatpush1.msra.mxu0 %v1068
    %1562 = vmatprep.subr.mxu0 %v1067
    %1563 = vmatpush1.msra.mxu0 %v1066
    %1564 = vmatprep.subr.mxu0 0.0
    %1565 = vmatpush2.msra.mxu0 0.0
    %1566 = vmatprep.subr.mxu0 0.0
    %1567 = vmatpush2.msra.mxu0 0.0
    %1568 = vmatprep.subr.mxu0 0.0
    %1569 = vmatpush2.msra.mxu0 0.0
    %1570 = vmatprep.subr.mxu0 0.0
    %1571 = vmatpush2.msra.mxu0 0.0
    %1572 = vmatprep.subr.mxu0 0.0
    %1573 = vmatpush2.msra.mxu0 0.0
    %1574 = vmatprep.subr.mxu0 0.0
    %1575 = vmatpush2.msra.mxu0 0.0
    %1576 = vmatprep.subr.mxu0 0.0
    %1577 = vmatpush2.msra.mxu0 0.0
    %1578 = vmatprep.subr.mxu0 0.0
    %1579 = vmatpush2.msra.mxu0 0.0
    %1580 = vmatprep.subr.mxu0 0.0
    %1581 = vmatpush2.msra.mxu0 0.0
    %1582 = vmatprep.subr.mxu0 0.0
    %1583 = vmatpush2.msra.mxu0 0.0
    %1584 = vmatprep.subr.mxu0 0.0
    %1585 = vmatpush2.msra.mxu0 0.0
    %1586 = vmatprep.subr.mxu0 0.0
    %1587 = vmatpush2.msra.mxu0 0.0
    %1588 = vmatprep.subr.mxu0 0.0
    %1589 = vmatpush2.msra.mxu0 0.0
    %1590 = vmatprep.subr.mxu0 0.0
    %1591 = vmatpush2.msra.mxu0 0.0
    %1592 = vmatprep.subr.mxu0 0.0
    %1593 = vmatpush2.msra.mxu0 0.0
    %1594 = vmatprep.subr.mxu0 0.0
    %1595 = vmatpush2.msra.mxu0 0.0
    %1596 = vmatprep.mubr.f32.mxu0 0.0
    %1597 = vmatmul.mubr.f32.gmra.mxu0 %v1530
    %v1598 = vpop.f32.mrf.mxu0
    %v1599 = vadd.f32 %v1526, %v1598
    %v1600 = vpop.f32.mrf.mxu0
    %v1601 = vadd.f32 %v1527, %v1600
    %1602 = vdwg.mxu0
    %v1603 = vxor.u32 %v1599, 2147483648
    %v1604 = vxor.u32 %v1601, 2147483648
    %v1605 = vmul.f32 %v1603, 1.442695
    %v1606 = vpow.pop %v1605
    %v1607 = vmul.f32 %v1604, 1.442695
    %v1608 = vpow.pop %v1607
    %v1609 = vadd.f32 %v1606, 1.0
    %v1610 = vadd.f32 %v1608, 1.0
    %v1611 = vrcp.pop %v1609
    %v1612 = vmul.f32 1.0, %v1611
    %v1613 = vrcp.pop %v1610
    %v1614 = vmul.f32 1.0, %v1613
    %v1615 = vtanh.pop %v1601
    %v1616 = vmul.f32 %v1612, %v1517
    %v1617 = vmul.f32 %v1612, %v1615
    %1619 = vrot.lane.b32.xlu0 %v1617, 64
    %v1620 = vpop.permute.xlu0 %1619
    %v1622 = vadd.f32 %v1616, %v1620
    %v1623 = vtanh.pop %v1622
    %v1624 = vmul.f32 %v1614, %v1623
    %v1625 = vadd.f32 %v1520, %v1624
    %1627 = vrot.lane.b32.xlu0 %v1624, 64
    %v1628 = vpop.permute.xlu0 %1627
    %v1629 = vrot.slane %v1192, 5
    %v1630 = vrot.slane %v1193, 5
    %v1633 = vsel %vm1090, %v1628, 0
    %1635 = vmatprep.subr.mxu0 0.0
    %1636 = vmatpush1.msra.mxu0 0.0
    %1637 = vmatprep.subr.mxu0 0.0
    %1638 = vmatpush1.msra.mxu0 0.0
    %1639 = vmatprep.subr.mxu0 0.0
    %1640 = vmatpush1.msra.mxu0 0.0
    %1641 = vmatprep.subr.mxu0 0.0
    %1642 = vmatpush1.msra.mxu0 0.0
    %1643 = vmatprep.subr.mxu0 0.0
    %1644 = vmatpush1.msra.mxu0 0.0
    %1645 = vmatprep.subr.mxu0 0.0
    %1646 = vmatpush1.msra.mxu0 0.0
    %1647 = vmatprep.subr.mxu0 0.0
    %1648 = vmatpush1.msra.mxu0 0.0
    %1649 = vmatprep.subr.mxu0 0.0
    %1650 = vmatpush1.msra.mxu0 0.0
    %1651 = vmatprep.subr.mxu0 %v1081
    %1652 = vmatpush1.msra.mxu0 %v1080
    %1653 = vmatprep.subr.mxu0 %v1079
    %1654 = vmatpush1.msra.mxu0 %v1078
    %1655 = vmatprep.subr.mxu0 %v1077
    %1656 = vmatpush1.msra.mxu0 %v1076
    %1657 = vmatprep.subr.mxu0 %v1075
    %1658 = vmatpush1.msra.mxu0 %v1074
    %1659 = vmatprep.subr.mxu0 %v1073
    %1660 = vmatpush1.msra.mxu0 %v1072
    %1661 = vmatprep.subr.mxu0 %v1071
    %1662 = vmatpush1.msra.mxu0 %v1070
    %1663 = vmatprep.subr.mxu0 %v1069
    %1664 = vmatpush1.msra.mxu0 %v1068
    %1665 = vmatprep.subr.mxu0 %v1067
    %1666 = vmatpush1.msra.mxu0 %v1066
    %1667 = vmatprep.subr.mxu0 0.0
    %1668 = vmatpush2.msra.mxu0 0.0
    %1669 = vmatprep.subr.mxu0 0.0
    %1670 = vmatpush2.msra.mxu0 0.0
    %1671 = vmatprep.subr.mxu0 0.0
    %1672 = vmatpush2.msra.mxu0 0.0
    %1673 = vmatprep.subr.mxu0 0.0
    %1674 = vmatpush2.msra.mxu0 0.0
    %1675 = vmatprep.subr.mxu0 0.0
    %1676 = vmatpush2.msra.mxu0 0.0
    %1677 = vmatprep.subr.mxu0 0.0
    %1678 = vmatpush2.msra.mxu0 0.0
    %1679 = vmatprep.subr.mxu0 0.0
    %1680 = vmatpush2.msra.mxu0 0.0
    %1681 = vmatprep.subr.mxu0 0.0
    %1682 = vmatpush2.msra.mxu0 0.0
    %1683 = vmatprep.subr.mxu0 0.0
    %1684 = vmatpush2.msra.mxu0 0.0
    %1685 = vmatprep.subr.mxu0 0.0
    %1686 = vmatpush2.msra.mxu0 0.0
    %1687 = vmatprep.subr.mxu0 0.0
    %1688 = vmatpush2.msra.mxu0 0.0
    %1689 = vmatprep.subr.mxu0 0.0
    %1690 = vmatpush2.msra.mxu0 0.0
    %1691 = vmatprep.subr.mxu0 0.0
    %1692 = vmatpush2.msra.mxu0 0.0
    %1693 = vmatprep.subr.mxu0 0.0
    %1694 = vmatpush2.msra.mxu0 0.0
    %1695 = vmatprep.subr.mxu0 0.0
    %1696 = vmatpush2.msra.mxu0 0.0
    %1697 = vmatprep.subr.mxu0 0.0
    %1698 = vmatpush2.msra.mxu0 0.0
    %1699 = vmatprep.mubr.f32.mxu0 0.0
    %1700 = vmatmul.mubr.f32.gmra.mxu0 %v1633
    %v1701 = vpop.f32.mrf.mxu0
    %v1702 = vadd.f32 %v1629, %v1701
    %v1703 = vpop.f32.mrf.mxu0
    %v1704 = vadd.f32 %v1630, %v1703
    %1705 = vdwg.mxu0
    %v1706 = vxor.u32 %v1702, 2147483648
    %v1707 = vxor.u32 %v1704, 2147483648
    %v1708 = vmul.f32 %v1706, 1.442695
    %v1709 = vpow.pop %v1708
    %v1710 = vmul.f32 %v1707, 1.442695
    %v1711 = vpow.pop %v1710
    %v1712 = vadd.f32 %v1709, 1.0
    %v1713 = vadd.f32 %v1711, 1.0
    %v1714 = vrcp.pop %v1712
    %v1715 = vmul.f32 1.0, %v1714
    %v1716 = vrcp.pop %v1713
    %v1717 = vmul.f32 1.0, %v1716
    %v1718 = vtanh.pop %v1704
    %v1719 = vmul.f32 %v1715, %v1622
    %v1720 = vmul.f32 %v1715, %v1718
    %1722 = vrot.lane.b32.xlu0 %v1720, 64
    %v1723 = vpop.permute.xlu0 %1722
    %v1725 = vadd.f32 %v1719, %v1723
    %v1726 = vtanh.pop %v1725
    %v1727 = vmul.f32 %v1717, %v1726
    %v1728 = vadd.f32 %v1625, %v1727
    %v1729 = vmul.f32 %v1728, 0.16666667
    %v1730 = vld [vmem:[%s6] sm:$0xff]
    %v1731 = vld [vmem:[%s6 + $0x8] sm:$0xff]
    %v1732 = vld [vmem:[%s6 + $0x10] sm:$0xff]
    %v1733 = vld [vmem:[%s6 + $0x18] sm:$0xff]
    %v1734 = vld [vmem:[%s6 + $0x20] sm:$0xff]
    %v1735 = vld [vmem:[%s6 + $0x28] sm:$0xff]
    %v1736 = vld [vmem:[%s6 + $0x30] sm:$0xff]
    %v1737 = vld [vmem:[%s6 + $0x38] sm:$0xff]
    %v1738 = vld [vmem:[%s7] sm:$0x1]
    %1740 = vrot.lane.b32.xlu0 %v1729, 64
    %v1741 = vpop.permute.xlu0 %1740
    %v1742 = vsel %vm1090, %v1741, 0
    %1744 = vmatprep.subr.mxu0 0.0
    %1745 = vmatpush1.msra.mxu0 0.0
    %1746 = vmatprep.subr.mxu0 0.0
    %1747 = vmatpush1.msra.mxu0 0.0
    %1748 = vmatprep.subr.mxu0 0.0
    %1749 = vmatpush1.msra.mxu0 0.0
    %1750 = vmatprep.subr.mxu0 0.0
    %1751 = vmatpush1.msra.mxu0 0.0
    %1752 = vmatprep.subr.mxu0 0.0
    %1753 = vmatpush1.msra.mxu0 0.0
    %1754 = vmatprep.subr.mxu0 0.0
    %1755 = vmatpush1.msra.mxu0 0.0
    %1756 = vmatprep.subr.mxu0 0.0
    %1757 = vmatpush1.msra.mxu0 0.0
    %1758 = vmatprep.subr.mxu0 0.0
    %1759 = vmatpush1.msra.mxu0 0.0
    %1760 = vmatprep.subr.mxu0 0.0
    %1761 = vmatpush1.msra.mxu0 %v1737
    %1762 = vmatprep.subr.mxu0 0.0
    %1763 = vmatpush1.msra.mxu0 %v1736
    %1764 = vmatprep.subr.mxu0 0.0
    %1765 = vmatpush1.msra.mxu0 %v1735
    %1766 = vmatprep.subr.mxu0 0.0
    %1767 = vmatpush1.msra.mxu0 %v1734
    %1768 = vmatprep.subr.mxu0 0.0
    %1769 = vmatpush1.msra.mxu0 %v1733
    %1770 = vmatprep.subr.mxu0 0.0
    %1771 = vmatpush1.msra.mxu0 %v1732
    %1772 = vmatprep.subr.mxu0 0.0
    %1773 = vmatpush1.msra.mxu0 %v1731
    %1774 = vmatprep.subr.mxu0 0.0
    %1775 = vmatpush1.msra.mxu0 %v1730
    %1776 = vmatprep.subr.mxu0 0.0
    %1777 = vmatpush2.msra.mxu0 0.0
    %1778 = vmatprep.subr.mxu0 0.0
    %1779 = vmatpush2.msra.mxu0 0.0
    %1780 = vmatprep.subr.mxu0 0.0
    %1781 = vmatpush2.msra.mxu0 0.0
    %1782 = vmatprep.subr.mxu0 0.0
    %1783 = vmatpush2.msra.mxu0 0.0
    %1784 = vmatprep.subr.mxu0 0.0
    %1785 = vmatpush2.msra.mxu0 0.0
    %1786 = vmatprep.subr.mxu0 0.0
    %1787 = vmatpush2.msra.mxu0 0.0
    %1788 = vmatprep.subr.mxu0 0.0
    %1789 = vmatpush2.msra.mxu0 0.0
    %1790 = vmatprep.subr.mxu0 0.0
    %1791 = vmatpush2.msra.mxu0 0.0
    %1792 = vmatprep.subr.mxu0 0.0
    %1793 = vmatpush2.msra.mxu0 0.0
    %1794 = vmatprep.subr.mxu0 0.0
    %1795 = vmatpush2.msra.mxu0 0.0
    %1796 = vmatprep.subr.mxu0 0.0
    %1797 = vmatpush2.msra.mxu0 0.0
    %1798 = vmatprep.subr.mxu0 0.0
    %1799 = vmatpush2.msra.mxu0 0.0
    %1800 = vmatprep.subr.mxu0 0.0
    %1801 = vmatpush2.msra.mxu0 0.0
    %1802 = vmatprep.subr.mxu0 0.0
    %1803 = vmatpush2.msra.mxu0 0.0
    %1804 = vmatprep.subr.mxu0 0.0
    %1805 = vmatpush2.msra.mxu0 0.0
    %1806 = vmatprep.subr.mxu0 0.0
    %1807 = vmatpush2.msra.mxu0 0.0
    %1808 = vmatprep.mubr.f32.mxu0 0.0
    %1809 = vmatmul.mubr.f32.gmra.mxu0 %v1742
    %v1810 = vpop.f32.mrf.mxu0
    %v1811 = vadd.f32 %v1738, %v1810
    %v1812 = vpop.f32.mrf.mxu0
    %1813 = vdwg.mxu0
    %vm1814 = vcmask 24576
    %1815 = vst.msk [vmem:[#allocation2] sm:$0x1] %vm1814, %v1811
    // Predicated region
    $region34: #{_forward_impl.1} parent=1 // pred_check
      _
    $region35: #{_forward_impl.1} parent=1 // pred_check_branch
      %1817 = sbr.rel (0) target = $region37
    $region36: #{_forward_impl.1} parent=1 // pred_region
      %s1819 = ssub.s32 16, 16
      %1820 = vsyncadd [#allocation3], %s1819
      %s1822 = sshll.u32 [#allocation2], 4
      %s1823 = int_to_ptr.vmem [resolvable:$true] %s1822
      %1825 = dma.vmem_to_hbm [thread:$0]  %s1823, 16, %s8, [#allocation3]
    $region37: #{_forward_impl.1} parent=1 // pred_fallthru
      _
    // Predicated region
    $region38: #{_forward_impl.1} parent=1 // pred_check
      _
    $region39: #{_forward_impl.1} parent=1 // pred_check_branch
      %1827 = sbr.rel (0) target = $region41
    $region40: #{_forward_impl.1} parent=1 // pred_region
      %1828 = dma.done [#allocation3], 16
    $region41: #{_forward_impl.1} parent=1 // pred_fallthru
      _
    %1829 = vsyncpa [#allocation3], 1

</llo_original>
